<compile_context>
chip_gen: v7x
topology: tpu7x:2x2x1
jax: 0.10.0
libtpu: 0.0.40
codegen_flags: <defaults>
</compile_context>

<pallas_src>
import jax
import jax.numpy as jnp
from jax.experimental import pallas as pl
from jax.experimental.pallas import tpu as pltpu


def _round_up(x, m):
    return (x + m - 1) // m * m


def _pick_tile(n):
    # Largest lane-friendly tile dividing N (capped at 1024 so the (t, t) score tile stays
    # well inside v7x's 64 MiB VMEM); prefer >= 2 tiles so the reduction pipeline
    # (init / accumulate / finalize) is actually exercised.
    for t in (1024, 512, 256, 128):
        if n % t == 0 and n // t >= 2:
            return t
    for t in (1024, 512, 256, 128):
        if n % t == 0:
            return t
    # TODO(synk): pad/mask positions when N is not a multiple of 128 (falls back to a
    # single full-size block, which is fine for small N but will blow VMEM for large N).
    return n


# ---------------- kernel 1: row-wise logsumexp of S = Q^T K (q/k projections fused) ----------
def _lse_kernel(xa_ref, xj_ref, wqt_ref, bq_ref, wk_ref, bk_ref, lse_ref, m_ref, l_ref):
    bj = pl.program_id(2)

    @pl.when(bj == 0)
    def _():
        m_ref[...] = jnp.full(m_ref.shape, -jnp.inf, jnp.float32)
        l_ref[...] = jnp.zeros(l_ref.shape, jnp.float32)

    xa = xa_ref[0]                                                     # (C, ta) query tile
    xj = xj_ref[0]                                                     # (C, tb) key tile
    # q in position-major (ta, CqP), k channel-major (CqP, tb); CqP padding is inert zeros.
    q = (jnp.dot(xa.T, wqt_ref[...], preferred_element_type=jnp.float32)
         + bq_ref[...]).astype(jnp.bfloat16)
    k = (jnp.dot(wk_ref[...], xj, preferred_element_type=jnp.float32)
         + bk_ref[...]).astype(jnp.bfloat16)
    s = jnp.dot(q, k, preferred_element_type=jnp.float32)              # (ta, tb) f32

    m_prev = m_ref[...]
    m_new = jnp.maximum(m_prev, jnp.max(s, axis=-1, keepdims=True))
    l_ref[...] = (l_ref[...] * jnp.exp(m_prev - m_new)
                  + jnp.sum(jnp.exp(s - m_new), axis=-1, keepdims=True))
    m_ref[...] = m_new

    @pl.when(bj == pl.num_programs(2) - 1)
    def _():
        lse_ref[0] = m_ref[...] + jnp.log(l_ref[...])


# ---------------- kernel 2: out[:, b] = sum_a v[:, a] * exp(S[a, b] - lse[a]) -----------------
def _out_kernel(xa_ref, xj_ref, lse_ref, wqt_ref, bq_ref, wk_ref, bk_ref,
                wv_ref, bv_ref, gamma_ref, o_ref, acc_ref):
    ai = pl.program_id(2)

    @pl.when(ai == 0)
    def _():
        acc_ref[...] = jnp.zeros(acc_ref.shape, jnp.float32)

    xa = xa_ref[0]                                                     # (C, ta) reduction tile
    xj = xj_ref[0]                                                     # (C, tb) output tile
    # Same q/k construction as kernel 1 -> s is consistent with the stored lse.
    q = (jnp.dot(xa.T, wqt_ref[...], preferred_element_type=jnp.float32)
         + bq_ref[...]).astype(jnp.bfloat16)
    k = (jnp.dot(wk_ref[...], xj, preferred_element_type=jnp.float32)
         + bk_ref[...]).astype(jnp.bfloat16)
    v = (jnp.dot(wv_ref[...], xa, preferred_element_type=jnp.float32)
         + bv_ref[...]).astype(jnp.bfloat16)                           # (C, ta)
    s = jnp.dot(q, k, preferred_element_type=jnp.float32)              # (ta, tb)
    p = jnp.exp(s - lse_ref[0]).astype(jnp.bfloat16)                   # exact softmax rows
    # (C, tb) += (C, ta) @ (ta, tb): MXU-native bf16 with f32 accumulation.
    acc_ref[...] += jnp.dot(v, p, preferred_element_type=jnp.float32)

    @pl.when(ai == pl.num_programs(2) - 1)
    def _():
        o_ref[0] = gamma_ref[0] * acc_ref[...] + xj_ref[0]


def self_attention_3d(x_ncdhw, wq, bq, wk, bk, wv, bv, gamma):
    """x: (B, C, D, H, W) f32. wq/wk: (Cq, C), wv: (C, C), gamma scalar."""
    B, C, D, H, W = x_ncdhw.shape
    Cq = wq.shape[0]
    N = D * H * W
    CqP = max(128, _round_up(Cq, 128))   # zero-pad q/k channels (inert) for MXU-native contraction
    t = _pick_tile(N)
    nt = N // t

    # NCDHW -> (B, C, N) is a pure reshape: no layout change, no extra HBM traffic.
    x_bcn = x_ncdhw.reshape(B, C, N).astype(jnp.float32)

    # Weight prep (tiny, outside the kernels): pad Cq -> CqP, keep weights VMEM-resident.
    wq_t = jnp.zeros((C, CqP), jnp.float32).at[:, :Cq].set(wq.T.astype(jnp.float32))
    bq_p = jnp.zeros((1, CqP), jnp.float32).at[0, :Cq].set(bq.astype(jnp.float32))
    wk_p = jnp.zeros((CqP, C), jnp.float32).at[:Cq, :].set(wk.astype(jnp.float32))
    bk_p = jnp.zeros((CqP, 1), jnp.float32).at[:Cq, 0].set(bk.astype(jnp.float32))
    wv_f = wv.astype(jnp.float32)
    bv_c = bv.astype(jnp.float32).reshape(C, 1)
    gamma_s = jnp.asarray(gamma, jnp.float32).reshape(1)

    cp_attn = pltpu.CompilerParams(
        dimension_semantics=("parallel", "parallel", "arbitrary"),
        vmem_limit_bytes=48 * 1024 * 1024)

    # ---- kernel 1: logsumexp over keys for every query row (q/k built in VMEM) ----
    lse = pl.pallas_call(
        _lse_kernel,
        out_shape=jax.ShapeDtypeStruct((B, N, 1), jnp.float32),
        grid_spec=pltpu.PrefetchScalarGridSpec(
            num_scalar_prefetch=0,
            grid=(B, nt, nt),                                          # (batch, query tile a, key tile j)
            in_specs=[
                pl.BlockSpec((1, C, t), lambda b, a, j: (b, 0, a)),    # x, query tile
                pl.BlockSpec((1, C, t), lambda b, a, j: (b, 0, j)),    # x, key tile
                pl.BlockSpec((C, CqP), lambda b, a, j: (0, 0)),        # Wq^T (padded)
                pl.BlockSpec((1, CqP), lambda b, a, j: (0, 0)),        # bq (padded)
                pl.BlockSpec((CqP, C), lambda b, a, j: (0, 0)),        # Wk (padded)
                pl.BlockSpec((CqP, 1), lambda b, a, j: (0, 0)),        # bk (padded)
            ],
            out_specs=pl.BlockSpec((1, t, 1), lambda b, a, j: (b, a, 0)),
            scratch_shapes=[pltpu.VMEM((t, 1), jnp.float32),           # running max
                            pltpu.VMEM((t, 1), jnp.float32)]),         # running sum
        compiler_params=cp_attn,
    )(x_bcn, x_bcn, wq_t, bq_p, wk_p, bk_p)

    # ---- kernel 2: accumulate v @ exp(S - lse) over query tiles, gamma residual ----
    y_bcn = pl.pallas_call(
        _out_kernel,
        out_shape=jax.ShapeDtypeStruct((B, C, N), jnp.float32),
        grid_spec=pltpu.PrefetchScalarGridSpec(
            num_scalar_prefetch=0,
            grid=(B, nt, nt),                                          # (batch, out tile j, reduce tile a)
            in_specs=[
                pl.BlockSpec((1, C, t), lambda b, j, a: (b, 0, a)),    # x, query/value tile (reduction)
                pl.BlockSpec((1, C, t), lambda b, j, a: (b, 0, j)),    # x, key/residual tile (output)
                pl.BlockSpec((1, t, 1), lambda b, j, a: (b, a, 0)),    # lse rows (reduction)
                pl.BlockSpec((C, CqP), lambda b, j, a: (0, 0)),        # Wq^T (padded)
                pl.BlockSpec((1, CqP), lambda b, j, a: (0, 0)),        # bq (padded)
                pl.BlockSpec((CqP, C), lambda b, j, a: (0, 0)),        # Wk (padded)
                pl.BlockSpec((CqP, 1), lambda b, j, a: (0, 0)),        # bk (padded)
                pl.BlockSpec((C, C), lambda b, j, a: (0, 0)),          # Wv
                pl.BlockSpec((C, 1), lambda b, j, a: (0, 0)),          # bv
                pl.BlockSpec(memory_space=pltpu.MemorySpace.SMEM),     # gamma scalar
            ],
            out_specs=pl.BlockSpec((1, C, t), lambda b, j, a: (b, 0, j)),
            scratch_shapes=[pltpu.VMEM((C, t), jnp.float32)]),         # output accumulator
        compiler_params=cp_attn,
    )(x_bcn, x_bcn, lse, wq_t, bq_p, wk_p, bk_p, wv_f, bv_c, gamma_s)

    return y_bcn.reshape(B, C, D, H, W)


def _reference(x, wq, bq, wk, bk, wv, bv, gamma):
    B, C, D, H, W = x.shape
    N = D * H * W
    xf = x.reshape(B, C, N)
    q = jnp.einsum('oc,bcn->bon', wq, xf) + bq[None, :, None]
    k = jnp.einsum('oc,bcn->bon', wk, xf) + bk[None, :, None]
    v = jnp.einsum('oc,bcn->bon', wv, xf) + bv[None, :, None]
    attn = jax.nn.softmax(jnp.einsum('bci,bcj->bij', q, k), axis=-1)
    out = jnp.einsum('bcj,bji->bci', v, attn).reshape(B, C, D, H, W)
    return gamma * out + x


if __name__ == "__main__":
    key = jax.random.PRNGKey(0)
    B, C, D, H, W = 2, 16, 8, 8, 8          # in_channels=16 -> q/k channels = 2; N = 512
    Cq = C // 8

    k_x, k_wq, k_bq, k_wk, k_bk, k_wv, k_bv = jax.random.split(key, 7)
    x = jax.random.normal(k_x, (B, C, D, H, W), jnp.float32)
    wq = jax.random.normal(k_wq, (Cq, C), jnp.float32) * 0.1
    bq = jax.random.normal(k_bq, (Cq,), jnp.float32) * 0.1
    wk = jax.random.normal(k_wk, (Cq, C), jnp.float32) * 0.1
    bk = jax.random.normal(k_bk, (Cq,), jnp.float32) * 0.1
    wv = jax.random.normal(k_wv, (C, C), jnp.float32) * 0.1
    bv = jax.random.normal(k_bv, (C,), jnp.float32) * 0.1
    # PyTorch inits gamma to 0 (identity output); use a nonzero deterministic value
    # so the attention path is actually exercised.
    gamma = jnp.float32(0.5)

    out = self_attention_3d(x, wq, bq, wk, bk, wv, bv, gamma)
    out = jax.block_until_ready(out)

    ref = _reference(x, wq, bq, wk, bk, wv, bv, gamma)
    assert out.shape == (B, C, D, H, W)
    # bf16 matmul inputs (q/k/v) -> relax tolerance vs the f32 reference.
    assert jnp.allclose(out, ref, rtol=1e-2, atol=1e-2), "mismatch vs JAX reference"
    print("KERNEL_OK")
</pallas_src>

<mosaic_0001>
module attributes {stable_mosaic.version = 11 : i64} {
  func.func @_lse_kernel(%arg0: i32, %arg1: i32, %arg2: i32, %arg3: memref<1x16x256xf32, #tpu.memory_space<vmem>>, %arg4: memref<1x16x256xf32, #tpu.memory_space<vmem>>, %arg5: memref<16x128xf32, #tpu.memory_space<vmem>>, %arg6: memref<1x128xf32, #tpu.memory_space<vmem>>, %arg7: memref<128x16xf32, #tpu.memory_space<vmem>>, %arg8: memref<128x1xf32, #tpu.memory_space<vmem>>, %arg9: memref<1x256x1xf32, #tpu.memory_space<vmem>>, %arg10: memref<256x1xf32, #tpu.memory_space<vmem>>, %arg11: memref<256x1xf32, #tpu.memory_space<vmem>>) attributes {dimension_semantics = [#tpu.dimension_semantics<parallel>, #tpu.dimension_semantics<parallel>, #tpu.dimension_semantics<arbitrary>], iteration_bounds = array<i64: 2, 2, 2>, scalar_prefetch = 0 : i64, scratch_operands = 2 : i64, tpu.core_type = #tpu.core_type<tc>, window_params = [{transform_indices = @transform_0, window_bounds = array<i64: 1, 16, 256>}, {transform_indices = @transform_1, window_bounds = array<i64: 1, 16, 256>}, {pipeline_mode = #tpu.pipeline_mode<synchronous>, transform_indices = @transform_2, window_bounds = array<i64: 16, 128>}, {pipeline_mode = #tpu.pipeline_mode<synchronous>, transform_indices = @transform_3, window_bounds = array<i64: 1, 128>}, {pipeline_mode = #tpu.pipeline_mode<synchronous>, transform_indices = @transform_4, window_bounds = array<i64: 128, 16>}, {pipeline_mode = #tpu.pipeline_mode<synchronous>, transform_indices = @transform_5, window_bounds = array<i64: 128, 1>}, {transform_indices = @transform_6, window_bounds = array<i64: 1, 256, 1>}]} {
    %c0_i32 = arith.constant 0 : i32
    %0 = arith.cmpi eq, %arg2, %c0_i32 : i32
    %1 = arith.extui %0 : i1 to i32
    %c0_i32_0 = arith.constant 0 : i32
    %2 = arith.cmpi ne, %1, %c0_i32_0 : i32
    scf.if %2 {
      %cst_27 = arith.constant 0xFF800000 : f32
      %40 = vector.broadcast %cst_27 : f32 to vector<256x1xf32>
      %c0_28 = arith.constant 0 : index
      %c0_29 = arith.constant 0 : index
      %41 = vector.load %arg10[%c0_28, %c0_29] : memref<256x1xf32, #tpu.memory_space<vmem>>, vector<256x1xf32>
      tpu.vector_store %arg10[%c0_28, %c0_29], %40 {strides = array<i32>} : memref<256x1xf32, #tpu.memory_space<vmem>>, vector<256x1xf32>,
      %cst_30 = arith.constant 0.000000e+00 : f32
      %42 = vector.broadcast %cst_30 : f32 to vector<256x1xf32>
      %c0_31 = arith.constant 0 : index
      %c0_32 = arith.constant 0 : index
      %43 = vector.load %arg11[%c0_31, %c0_32] : memref<256x1xf32, #tpu.memory_space<vmem>>, vector<256x1xf32>
      tpu.vector_store %arg11[%c0_31, %c0_32], %42 {strides = array<i32>} : memref<256x1xf32, #tpu.memory_space<vmem>>, vector<256x1xf32>,
    } else {
    }
    %c0 = arith.constant 0 : index
    %c0_1 = arith.constant 0 : index
    %c0_2 = arith.constant 0 : index
    %3 = vector.load %arg3[%c0, %c0_1, %c0_2] : memref<1x16x256xf32, #tpu.memory_space<vmem>>, vector<1x16x256xf32>
    %4 = vector.shape_cast %3 : vector<1x16x256xf32> to vector<16x256xf32>
    %c0_3 = arith.constant 0 : index
    %c0_4 = arith.constant 0 : index
    %c0_5 = arith.constant 0 : index
    %5 = vector.load %arg4[%c0_3, %c0_4, %c0_5] : memref<1x16x256xf32, #tpu.memory_space<vmem>>, vector<1x16x256xf32>
    %6 = vector.shape_cast %5 : vector<1x16x256xf32> to vector<16x256xf32>
    %7 = tpu.transpose %4, [1, 0] : vector<16x256xf32> -> vector<256x16xf32>
    %c0_6 = arith.constant 0 : index
    %c0_7 = arith.constant 0 : index
    %8 = vector.load %arg5[%c0_6, %c0_7] : memref<16x128xf32, #tpu.memory_space<vmem>>, vector<16x128xf32>
    %cst = arith.constant dense<0.000000e+00> : vector<256x128xf32>
    %9 = tpu.matmul %7, %8, %cst {dimension_numbers = #tpu.dot_dimension_numbers<[1], [0], [0], [1], [0, 0, 1, 1], [], []>} : vector<256x16xf32>, vector<16x128xf32>, vector<256x128xf32> -> vector<256x128xf32>
    %c0_8 = arith.constant 0 : index
    %c0_9 = arith.constant 0 : index
    %10 = vector.load %arg6[%c0_8, %c0_9] : memref<1x128xf32, #tpu.memory_space<vmem>>, vector<1x128xf32>
    %11 = vector.broadcast %10 : vector<1x128xf32> to vector<256x128xf32>
    %12 = arith.addf %9, %11 : vector<256x128xf32>
    %13 = arith.truncf %12 : vector<256x128xf32> to vector<256x128xbf16>
    %c0_10 = arith.constant 0 : index
    %c0_11 = arith.constant 0 : index
    %14 = vector.load %arg7[%c0_10, %c0_11] : memref<128x16xf32, #tpu.memory_space<vmem>>, vector<128x16xf32>
    %cst_12 = arith.constant dense<0.000000e+00> : vector<128x256xf32>
    %15 = tpu.matmul %14, %6, %cst_12 {dimension_numbers = #tpu.dot_dimension_numbers<[1], [0], [0], [1], [0, 0, 1, 1], [], []>} : vector<128x16xf32>, vector<16x256xf32>, vector<128x256xf32> -> vector<128x256xf32>
    %c0_13 = arith.constant 0 : index
    %c0_14 = arith.constant 0 : index
    %16 = vector.load %arg8[%c0_13, %c0_14] : memref<128x1xf32, #tpu.memory_space<vmem>>, vector<128x1xf32>
    %17 = vector.broadcast %16 : vector<128x1xf32> to vector<128x256xf32>
    %18 = arith.addf %15, %17 : vector<128x256xf32>
    %19 = arith.truncf %18 : vector<128x256xf32> to vector<128x256xbf16>
    %cst_15 = arith.constant dense<0.000000e+00> : vector<256x256xf32>
    %20 = tpu.matmul %13, %19, %cst_15 {dimension_numbers = #tpu.dot_dimension_numbers<[1], [0], [0], [1], [0, 0, 1, 1], [], []>} : vector<256x128xbf16>, vector<128x256xbf16>, vector<256x256xf32> -> vector<256x256xf32>
    %c0_16 = arith.constant 0 : index
    %c0_17 = arith.constant 0 : index
    %21 = vector.load %arg10[%c0_16, %c0_17] : memref<256x1xf32, #tpu.memory_space<vmem>>, vector<256x1xf32>
    %cst_18 = arith.constant dense<0xFF800000> : vector<256xf32>
    %22 = vector.multi_reduction <maximumf>, %20, %cst_18 [1] : vector<256x256xf32> to vector<256xf32>
    %23 = vector.shape_cast %22 : vector<256xf32> to vector<256x1xf32>
    %24 = arith.maximumf %21, %23 : vector<256x1xf32>
    %c0_19 = arith.constant 0 : index
    %c0_20 = arith.constant 0 : index
    %25 = vector.load %arg11[%c0_19, %c0_20] : memref<256x1xf32, #tpu.memory_space<vmem>>, vector<256x1xf32>
    %26 = arith.subf %21, %24 : vector<256x1xf32>
    %27 = math.exp %26 : vector<256x1xf32>
    %28 = arith.mulf %25, %27 : vector<256x1xf32>
    %29 = vector.broadcast %24 : vector<256x1xf32> to vector<256x256xf32>
    %30 = arith.subf %20, %29 : vector<256x256xf32>
    %31 = math.exp %30 : vector<256x256xf32>
    %cst_21 = arith.constant dense<0.000000e+00> : vector<256xf32>
    %32 = vector.multi_reduction <add>, %31, %cst_21 [1] : vector<256x256xf32> to vector<256xf32>
    %33 = vector.shape_cast %32 : vector<256xf32> to vector<256x1xf32>
    %34 = arith.addf %28, %33 : vector<256x1xf32>
    %c0_22 = arith.constant 0 : index
    %c0_23 = arith.constant 0 : index
    %35 = vector.load %arg11[%c0_22, %c0_23] : memref<256x1xf32, #tpu.memory_space<vmem>>, vector<256x1xf32>
    tpu.vector_store %arg11[%c0_22, %c0_23], %34 {strides = array<i32>} : memref<256x1xf32, #tpu.memory_space<vmem>>, vector<256x1xf32>,
    %c0_24 = arith.constant 0 : index
    %c0_25 = arith.constant 0 : index
    %36 = vector.load %arg10[%c0_24, %c0_25] : memref<256x1xf32, #tpu.memory_space<vmem>>, vector<256x1xf32>
    tpu.vector_store %arg10[%c0_24, %c0_25], %24 {strides = array<i32>} : memref<256x1xf32, #tpu.memory_space<vmem>>, vector<256x1xf32>,
    %c1_i32 = arith.constant 1 : i32
    %37 = arith.cmpi eq, %arg2, %c1_i32 : i32
    %38 = arith.extui %37 : i1 to i32
    %c0_i32_26 = arith.constant 0 : i32
    %39 = arith.cmpi ne, %38, %c0_i32_26 : i32
    scf.if %39 {
      %c0_27 = arith.constant 0 : index
      %c0_28 = arith.constant 0 : index
      %40 = vector.load %arg10[%c0_27, %c0_28] : memref<256x1xf32, #tpu.memory_space<vmem>>, vector<256x1xf32>
      %c0_29 = arith.constant 0 : index
      %c0_30 = arith.constant 0 : index
      %41 = vector.load %arg11[%c0_29, %c0_30] : memref<256x1xf32, #tpu.memory_space<vmem>>, vector<256x1xf32>
      %42 = math.log %41 : vector<256x1xf32>
      %43 = arith.addf %40, %42 : vector<256x1xf32>
      %c0_31 = arith.constant 0 : index
      %c0_32 = arith.constant 0 : index
      %c0_33 = arith.constant 0 : index
      %44 = vector.load %arg9[%c0_31, %c0_32, %c0_33] : memref<1x256x1xf32, #tpu.memory_space<vmem>>, vector<1x256x1xf32>
      %45 = vector.shape_cast %44 : vector<1x256x1xf32> to vector<256x1xf32>
      %46 = vector.shape_cast %43 : vector<256x1xf32> to vector<1x256x1xf32>
      tpu.vector_store %arg9[%c0_31, %c0_32, %c0_33], %46 {strides = array<i32>} : memref<1x256x1xf32, #tpu.memory_space<vmem>>, vector<1x256x1xf32>,
    } else {
    }
    return
  }
  func.func @transform_0(%arg0: i32, %arg1: i32, %arg2: i32) -> (i32, i32, i32) {
    %c0_i32 = arith.constant 0 : i32
    %c0_i32_0 = arith.constant 0 : i32
    return %arg0, %c0_i32, %arg1 : i32, i32, i32
  }
  func.func @transform_1(%arg0: i32, %arg1: i32, %arg2: i32) -> (i32, i32, i32) {
    %c0_i32 = arith.constant 0 : i32
    %c0_i32_0 = arith.constant 0 : i32
    return %arg0, %c0_i32, %arg2 : i32, i32, i32
  }
  func.func @transform_2(%arg0: i32, %arg1: i32, %arg2: i32) -> (i32, i32) {
    %c0_i32 = arith.constant 0 : i32
    %c0_i32_0 = arith.constant 0 : i32
    %c0_i32_1 = arith.constant 0 : i32
    return %c0_i32, %c0_i32_0 : i32, i32
  }
  func.func @transform_3(%arg0: i32, %arg1: i32, %arg2: i32) -> (i32, i32) {
    %c0_i32 = arith.constant 0 : i32
    %c0_i32_0 = arith.constant 0 : i32
    %c0_i32_1 = arith.constant 0 : i32
    return %c0_i32, %c0_i32_0 : i32, i32
  }
  func.func @transform_4(%arg0: i32, %arg1: i32, %arg2: i32) -> (i32, i32) {
    %c0_i32 = arith.constant 0 : i32
    %c0_i32_0 = arith.constant 0 : i32
    %c0_i32_1 = arith.constant 0 : i32
    return %c0_i32, %c0_i32_0 : i32, i32
  }
  func.func @transform_5(%arg0: i32, %arg1: i32, %arg2: i32) -> (i32, i32) {
    %c0_i32 = arith.constant 0 : i32
    %c0_i32_0 = arith.constant 0 : i32
    %c0_i32_1 = arith.constant 0 : i32
    return %c0_i32, %c0_i32_0 : i32, i32
  }
  func.func @transform_6(%arg0: i32, %arg1: i32, %arg2: i32) -> (i32, i32, i32) {
    %c0_i32 = arith.constant 0 : i32
    %c0_i32_0 = arith.constant 0 : i32
    return %arg0, %arg1, %c0_i32 : i32, i32, i32
  }
}

</mosaic_0001>

<llo_original>
// kernel: tpu_custom_call.1
$region0: #{tpu_custom_call.1}
  #allocation0 [shape = 'u32[]', space=smem, size = 0x4, offset = 0x4, fixed_abs, tag = 'smem constant byte address 0x4 - core index']
  #allocation1 [shape = 'u32[144,128]{1,0:T(1,128)}', space=vmem, size = 0x12000, scoped, tag = 'internal scratch']
  #allocation2 [shape = 'f32[256,1]{1,0:T(8,128)}', space=vmem, size = 0x20000, scoped, tag = 'scratch operand']
  #allocation3 [shape = 'f32[256,1]{1,0:T(8,128)}', space=vmem, size = 0x20000, scoped, tag = 'scratch operand']
  %s0 = inlined_call_operand.vmem [shape: f32[2,16,512], index: 0, kind: input, shape index: {}]
  %s1 = inlined_call_operand.vmem [shape: f32[2,16,512], index: 1, kind: input, shape index: {}]
  %s2 = inlined_call_operand.vmem [shape: f32[16,128], index: 2, kind: input, shape index: {}]
  %s3 = inlined_call_operand.vmem [shape: f32[1,128], index: 3, kind: input, shape index: {}]
  %s4 = inlined_call_operand.vmem [shape: f32[128,16], index: 4, kind: input, shape index: {}]
  %s5 = inlined_call_operand.vmem [shape: f32[128,1], index: 5, kind: input, shape index: {}]
  %s6 = inlined_call_operand.vmem [shape: f32[2,512,1], index: 6, kind: output, shape index: {}]
  %s7 = sld [smem:[#allocation0]]
  $region111: #{tpu_custom_call.1} parent=0
    _
  %s9 = ssub.s32 1, %s7
  %s10 = scalar_select 0, %s9, %s7
  $region1: #{tpu_custom_call.1} parent=0
    #allocation4 [shape = 'u8[32768]{0}', space=vmem, size = 0x8000, scoped, tag = 'input window, operand 0']
    #allocation5 [shape = 'u8[32768]{0}', space=vmem, size = 0x8000, scoped, tag = 'input window, operand 1']
    loop: start=0, step=1, limit=10
    $region2: #{tpu_custom_call.1} parent=1 // loop_pre_header
      _
    $region3: #{tpu_custom_call.1} parent=1 // loop_header
      %s12 = sphi 0, %s16
      %p13 = scmp.ge.s32.totalorder %s12, 10
      %s19 = sphi 0, %s38
      %s20 = sphi 0, %s34
      %s21 = sphi 0, %s30
      %s22 = sphi 0, %s19
      %s23 = sphi 0, %s20
      %s24 = sphi 0, %s21
      %s25 = sphi 0, %s22
      %s26 = sphi 0, %s23
      %s27 = sphi 0, %s24
      %s43 = sphi 0, %s45
      %s46 = sphi 0, %s43
      %s47 = sphi 0, %s46
      %s63 = sphi 0, %s47
      %s71 = sphi 0, %s73
      %s74 = sphi 0, %s71
      %s75 = sphi 0, %s74
      %s91 = sphi 0, %s75
      %s95 = sphi 0, %s95
      %s97 = sphi 0, %s95
      %s98 = sphi 0, %s97
      %s112 = sphi 0, %s98
      %s116 = sphi 0, %s116
      %s118 = sphi 0, %s116
      %s119 = sphi 0, %s118
      %s133 = sphi 0, %s119
      %s137 = sphi 0, %s137
      %s139 = sphi 0, %s137
      %s140 = sphi 0, %s139
      %s154 = sphi 0, %s140
      %s158 = sphi 0, %s158
      %s160 = sphi 0, %s158
      %s161 = sphi 0, %s160
      %s175 = sphi 0, %s161
      %s183 = sphi 0, %s185
      %s186 = sphi 0, %s183
      %s187 = sphi 0, %s186
      %s203 = sphi 0, %s187
    $region4: #{tpu_custom_call.1} parent=1 // loop_header_branch
      %15 = sbr.rel (%p13) target = $region8
    $region5: #{tpu_custom_call.1} parent=1 // loop_body
      %s17 = ssub.s32 %s12, 1
      %s18 = ssub.s32 %s12, 2
      %s28 = sadd.s32 1, %s21
      %p29 = scmp.ge.s32.totalorder %s28, 2
      %s30 = scalar_select %p29, 0, %s28
      %s31 = sadd.s32 1, %s20
      %s32 = scalar_select %p29, %s31, %s20
      %p33 = scmp.ge.s32.totalorder %s32, 2
      %s34 = scalar_select %p33, 0, %s32
      %s35 = sadd.s32 1, %s19
      %s36 = scalar_select %p33, %s35, %s19
      %p37 = scmp.ge.s32.totalorder %s36, 2
      %s38 = scalar_select %p37, 0, %s36
      %s39 = ssub.s32 %s19, %s38
      %s40 = ssub.s32 %s20, %s34
      %s41 = sor.u32 %s39, %s40
      %p42 = scmp.eq.s32.totalorder %s41, 0
      %s44 = sadd.s32 %s43, 1
      %s45 = scalar_select %p42, %s43, %s44
      %p48 = pneg %p42
      %p49 = scmp.eq.s32.totalorder %s12, 7
      %p50 = por %p48, %p49
      %p51 = scmp.ne.s32.totalorder %s43, %s46
      %p52 = scmp.eq.s32.totalorder %s12, 0
      %p53 = por %p51, %p52
      %p54 = scmp.ne.s32.totalorder %s43, %s46
      %p55 = scmp.eq.s32.totalorder %s17, 7
      %p56 = por %p54, %p55
      %p57 = scmp.ne.s32.totalorder %s46, %s47
      %p58 = scmp.eq.s32.totalorder %s17, 0
      %p59 = por %p57, %p58
      %p60 = scmp.ne.s32.totalorder %s46, %s47
      %p61 = scmp.eq.s32.totalorder %s18, 7
      %p62 = por %p60, %p61
      %p64 = scmp.ne.s32.totalorder %s47, %s63
      %p65 = scmp.eq.s32.totalorder %s18, 0
      %p66 = por %p64, %p65
      %s67 = ssub.s32 %s19, %s38
      %s68 = ssub.s32 %s21, %s30
      %s69 = sor.u32 %s67, %s68
      %p70 = scmp.eq.s32.totalorder %s69, 0
      %s72 = sadd.s32 %s71, 1
      %s73 = scalar_select %p70, %s71, %s72
      %p76 = pneg %p70
      %p77 = scmp.eq.s32.totalorder %s12, 7
      %p78 = por %p76, %p77
      %p79 = scmp.ne.s32.totalorder %s71, %s74
      %p80 = scmp.eq.s32.totalorder %s12, 0
      %p81 = por %p79, %p80
      %p82 = scmp.ne.s32.totalorder %s71, %s74
      %p83 = scmp.eq.s32.totalorder %s17, 7
      %p84 = por %p82, %p83
      %p85 = scmp.ne.s32.totalorder %s74, %s75
      %p86 = scmp.eq.s32.totalorder %s17, 0
      %p87 = por %p85, %p86
      %p88 = scmp.ne.s32.totalorder %s74, %s75
      %p89 = scmp.eq.s32.totalorder %s18, 7
      %p90 = por %p88, %p89
      %p92 = scmp.ne.s32.totalorder %s75, %s91
      %p93 = scmp.eq.s32.totalorder %s18, 0
      %p94 = por %p92, %p93
      %s96 = sadd.s32 %s95, 1
      %p99 = scmp.eq.s32.totalorder %s12, 7
      %p100 = scmp.ne.s32.totalorder %s95, %s97
      %p101 = scmp.eq.s32.totalorder %s12, 0
      %p102 = por %p100, %p101
      %p103 = scmp.ne.s32.totalorder %s95, %s97
      %p104 = scmp.eq.s32.totalorder %s17, 7
      %p105 = por %p103, %p104
      %p106 = scmp.ne.s32.totalorder %s97, %s98
      %p107 = scmp.eq.s32.totalorder %s17, 0
      %p108 = por %p106, %p107
      %p109 = scmp.ne.s32.totalorder %s97, %s98
      %p110 = scmp.eq.s32.totalorder %s18, 7
      %p111 = por %p109, %p110
      %p113 = scmp.ne.s32.totalorder %s98, %s112
      %p114 = scmp.eq.s32.totalorder %s18, 0
      %p115 = por %p113, %p114
      %s117 = sadd.s32 %s116, 1
      %p120 = scmp.eq.s32.totalorder %s12, 7
      %p121 = scmp.ne.s32.totalorder %s116, %s118
      %p122 = scmp.eq.s32.totalorder %s12, 0
      %p123 = por %p121, %p122
      %p124 = scmp.ne.s32.totalorder %s116, %s118
      %p125 = scmp.eq.s32.totalorder %s17, 7
      %p126 = por %p124, %p125
      %p127 = scmp.ne.s32.totalorder %s118, %s119
      %p128 = scmp.eq.s32.totalorder %s17, 0
      %p129 = por %p127, %p128
      %p130 = scmp.ne.s32.totalorder %s118, %s119
      %p131 = scmp.eq.s32.totalorder %s18, 7
      %p132 = por %p130, %p131
      %p134 = scmp.ne.s32.totalorder %s119, %s133
      %p135 = scmp.eq.s32.totalorder %s18, 0
      %p136 = por %p134, %p135
      %s138 = sadd.s32 %s137, 1
      %p141 = scmp.eq.s32.totalorder %s12, 7
      %p142 = scmp.ne.s32.totalorder %s137, %s139
      %p143 = scmp.eq.s32.totalorder %s12, 0
      %p144 = por %p142, %p143
      %p145 = scmp.ne.s32.totalorder %s137, %s139
      %p146 = scmp.eq.s32.totalorder %s17, 7
      %p147 = por %p145, %p146
      %p148 = scmp.ne.s32.totalorder %s139, %s140
      %p149 = scmp.eq.s32.totalorder %s17, 0
      %p150 = por %p148, %p149
      %p151 = scmp.ne.s32.totalorder %s139, %s140
      %p152 = scmp.eq.s32.totalorder %s18, 7
      %p153 = por %p151, %p152
      %p155 = scmp.ne.s32.totalorder %s140, %s154
      %p156 = scmp.eq.s32.totalorder %s18, 0
      %p157 = por %p155, %p156
      %s159 = sadd.s32 %s158, 1
      %p162 = scmp.eq.s32.totalorder %s12, 7
      %p163 = scmp.ne.s32.totalorder %s158, %s160
      %p164 = scmp.eq.s32.totalorder %s12, 0
      %p165 = por %p163, %p164
      %p166 = scmp.ne.s32.totalorder %s158, %s160
      %p167 = scmp.eq.s32.totalorder %s17, 7
      %p168 = por %p166, %p167
      %p169 = scmp.ne.s32.totalorder %s160, %s161
      %p170 = scmp.eq.s32.totalorder %s17, 0
      %p171 = por %p169, %p170
      %p172 = scmp.ne.s32.totalorder %s160, %s161
      %p173 = scmp.eq.s32.totalorder %s18, 7
      %p174 = por %p172, %p173
      %p176 = scmp.ne.s32.totalorder %s161, %s175
      %p177 = scmp.eq.s32.totalorder %s18, 0
      %p178 = por %p176, %p177
      %s179 = ssub.s32 %s19, %s38
      %s180 = ssub.s32 %s20, %s34
      %s181 = sor.u32 %s179, %s180
      %p182 = scmp.eq.s32.totalorder %s181, 0
      %s184 = sadd.s32 %s183, 1
      %s185 = scalar_select %p182, %s183, %s184
      %p188 = pneg %p182
      %p189 = scmp.eq.s32.totalorder %s12, 7
      %p190 = por %p188, %p189
      %p191 = scmp.ne.s32.totalorder %s183, %s186
      %p192 = scmp.eq.s32.totalorder %s12, 0
      %p193 = por %p191, %p192
      %p194 = scmp.ne.s32.totalorder %s183, %s186
      %p195 = scmp.eq.s32.totalorder %s17, 7
      %p196 = por %p194, %p195
      %p197 = scmp.ne.s32.totalorder %s186, %s187
      %p198 = scmp.eq.s32.totalorder %s17, 0
      %p199 = por %p197, %p198
      %p200 = scmp.ne.s32.totalorder %s186, %s187
      %p201 = scmp.eq.s32.totalorder %s18, 7
      %p202 = por %p200, %p201
      %p204 = scmp.ne.s32.totalorder %s187, %s203
      %p205 = scmp.eq.s32.totalorder %s18, 0
      %p206 = por %p204, %p205
      %p207 = scmp.le.s32.totalorder 1, %s12
      %p208 = scmp.lt.s32.totalorder %s12, 9
      %p209 = pnand %p207, %p208
      %p210 = pneg %p209
      // Predicated region
      $region9: #{tpu_custom_call.1} parent=5 // pred_check
        _
      $region10: #{tpu_custom_call.1} parent=5 // pred_check_branch
        %212 = sbr.rel (%p209) target = $region12
      $region11: #{tpu_custom_call.1} parent=5 // pred_region
        %s213 = ssub.s32 %s12, 1
        // Predicated region
        $region13: #{tpu_custom_call.1} parent=11 // pred_check
          %p214 = pneg %p108
        $region14: #{tpu_custom_call.1} parent=11 // pred_check_branch
          %216 = sbr.rel (%p214) target = $region16
        $region15: #{tpu_custom_call.1} parent=11 // pred_region
          _
        $region16: #{tpu_custom_call.1} parent=11 // pred_fallthru
          _
        // Predicated region
        $region17: #{tpu_custom_call.1} parent=11 // pred_check
          %p217 = pneg %p129
        $region18: #{tpu_custom_call.1} parent=11 // pred_check_branch
          %219 = sbr.rel (%p217) target = $region20
        $region19: #{tpu_custom_call.1} parent=11 // pred_region
          _
        $region20: #{tpu_custom_call.1} parent=11 // pred_fallthru
          _
        // Predicated region
        $region21: #{tpu_custom_call.1} parent=11 // pred_check
          %p220 = pneg %p150
        $region22: #{tpu_custom_call.1} parent=11 // pred_check_branch
          %222 = sbr.rel (%p220) target = $region24
        $region23: #{tpu_custom_call.1} parent=11 // pred_region
          _
        $region24: #{tpu_custom_call.1} parent=11 // pred_fallthru
          _
        // Predicated region
        $region25: #{tpu_custom_call.1} parent=11 // pred_check
          %p223 = pneg %p171
        $region26: #{tpu_custom_call.1} parent=11 // pred_check_branch
          %225 = sbr.rel (%p223) target = $region28
        $region27: #{tpu_custom_call.1} parent=11 // pred_region
          _
        $region28: #{tpu_custom_call.1} parent=11 // pred_fallthru
          _
      $region12: #{tpu_custom_call.1} parent=5 // pred_fallthru
        _
      %p226 = scmp.lt.s32.totalorder %s12, 8
      // Predicated region
      $region29: #{tpu_custom_call.1} parent=5 // pred_check
        %p227 = pneg %p226
      $region30: #{tpu_custom_call.1} parent=5 // pred_check_branch
        %229 = sbr.rel (%p227) target = $region32
      $region31: #{tpu_custom_call.1} parent=5 // pred_region
        // Predicated region
        $region33: #{tpu_custom_call.1} parent=31 // pred_check
          %p230 = pneg %p53
        $region34: #{tpu_custom_call.1} parent=31 // pred_check_branch
          %232 = sbr.rel (%p230) target = $region36
        $region35: #{tpu_custom_call.1} parent=31 // pred_region
          %s233 = sand.u32 %s43, 1
          %s234 = sand.u32 %s43, 1
          %s235 = smul.addr %s234, 32
          %s236 = scalar_lea.vmem [#allocation4], %s235
          %s237 = smul.u32 2, %s20
          %s238 = smul.addr %s19, 8
          %s239 = sadd.s32 %s237, %s238
          %s240 = smul.addr %s239, 8
          %s241 = scalar_lea.vmem %s0, %s240
          // Predicated region
          $region37: #{tpu_custom_call.1} parent=35 // pred_check
            _
          $region38: #{tpu_custom_call.1} parent=35 // pred_check_branch
            %243 = sbr.rel (0) target = $region40
          $region39: #{tpu_custom_call.1} parent=35 // pred_region
            // Predicated region
            $region41: #{tpu_custom_call.1} parent=39 // pred_check
              _
            $region42: #{tpu_custom_call.1} parent=39 // pred_check_branch
              %245 = sbr.rel (0) target = $region44
            $region43: #{tpu_custom_call.1} parent=39 // pred_region
              loop: start=0, step=1, limit=1
              $region45: #{tpu_custom_call.1} parent=43 // loop_pre_header
                _
              $region46: #{tpu_custom_call.1} parent=43 // loop_header
                %s247 = sphi 0, %s251
                %p248 = scmp.ge.s32.totalorder %s247, 1
                %s252 = sphi %s241, %s241
                %s253 = sphi %s236, %s236
              $region47: #{tpu_custom_call.1} parent=43 // loop_header_branch
                %250 = sbr.rel (%p248) target = $region51
              $region48: #{tpu_custom_call.1} parent=43 // loop_body
                %v254 = vld [vmem:[%s252] sm:$0xff]
                %255 = vst [vmem:[%s253] sm:$0xff] %v254
                %v256 = vld [vmem:[%s252 + $0x8] sm:$0xff]
                %257 = vst [vmem:[%s253 + $0x8] sm:$0xff] %v256
                %v258 = vld [vmem:[%s252 + $0x20] sm:$0xff]
                %259 = vst [vmem:[%s253 + $0x10] sm:$0xff] %v258
                %v260 = vld [vmem:[%s252 + $0x28] sm:$0xff]
                %261 = vst [vmem:[%s253 + $0x18] sm:$0xff] %v260
              $region49: #{tpu_custom_call.1} parent=43 // loop_footer
                %s251 = sadd.s32 1, %s247
              $region50: #{tpu_custom_call.1} parent=43 // loop_footer_branch
                %246 = sbr.rel target = $region46
              $region51: #{tpu_custom_call.1} parent=43 // loop_exit
                _
            $region44: #{tpu_custom_call.1} parent=39 // pred_fallthru
              _
            // Predicated region
            $region52: #{tpu_custom_call.1} parent=39 // pred_check
              _
            $region53: #{tpu_custom_call.1} parent=39 // pred_check_branch
              %263 = sbr.rel target = $region55
            $region54: #{tpu_custom_call.1} parent=39 // pred_region
              _
            $region55: #{tpu_custom_call.1} parent=39 // pred_fallthru
              _
          $region40: #{tpu_custom_call.1} parent=35 // pred_fallthru
            _
          %264 = vnop
        $region36: #{tpu_custom_call.1} parent=31 // pred_fallthru
          _
        // Predicated region
        $region56: #{tpu_custom_call.1} parent=31 // pred_check
          %p265 = pneg %p81
        $region57: #{tpu_custom_call.1} parent=31 // pred_check_branch
          %267 = sbr.rel (%p265) target = $region59
        $region58: #{tpu_custom_call.1} parent=31 // pred_region
          %s268 = sand.u32 %s71, 1
          %s269 = sand.u32 %s71, 1
          %s270 = smul.addr %s269, 32
          %s271 = scalar_lea.vmem [#allocation5], %s270
          %s272 = smul.u32 2, %s21
          %s273 = smul.addr %s19, 8
          %s274 = sadd.s32 %s272, %s273
          %s275 = smul.addr %s274, 8
          %s276 = scalar_lea.vmem %s1, %s275
          // Predicated region
          $region60: #{tpu_custom_call.1} parent=58 // pred_check
            _
          $region61: #{tpu_custom_call.1} parent=58 // pred_check_branch
            %278 = sbr.rel (0) target = $region63
          $region62: #{tpu_custom_call.1} parent=58 // pred_region
            // Predicated region
            $region64: #{tpu_custom_call.1} parent=62 // pred_check
              _
            $region65: #{tpu_custom_call.1} parent=62 // pred_check_branch
              %280 = sbr.rel (0) target = $region67
            $region66: #{tpu_custom_call.1} parent=62 // pred_region
              loop: start=0, step=1, limit=1
              $region68: #{tpu_custom_call.1} parent=66 // loop_pre_header
                _
              $region69: #{tpu_custom_call.1} parent=66 // loop_header
                %s282 = sphi 0, %s286
                %p283 = scmp.ge.s32.totalorder %s282, 1
                %s287 = sphi %s276, %s276
                %s288 = sphi %s271, %s271
              $region70: #{tpu_custom_call.1} parent=66 // loop_header_branch
                %285 = sbr.rel (%p283) target = $region74
              $region71: #{tpu_custom_call.1} parent=66 // loop_body
                %v289 = vld [vmem:[%s287] sm:$0xff]
                %290 = vst [vmem:[%s288] sm:$0xff] %v289
                %v291 = vld [vmem:[%s287 + $0x8] sm:$0xff]
                %292 = vst [vmem:[%s288 + $0x8] sm:$0xff] %v291
                %v293 = vld [vmem:[%s287 + $0x20] sm:$0xff]
                %294 = vst [vmem:[%s288 + $0x10] sm:$0xff] %v293
                %v295 = vld [vmem:[%s287 + $0x28] sm:$0xff]
                %296 = vst [vmem:[%s288 + $0x18] sm:$0xff] %v295
              $region72: #{tpu_custom_call.1} parent=66 // loop_footer
                %s286 = sadd.s32 1, %s282
              $region73: #{tpu_custom_call.1} parent=66 // loop_footer_branch
                %281 = sbr.rel target = $region69
              $region74: #{tpu_custom_call.1} parent=66 // loop_exit
                _
            $region67: #{tpu_custom_call.1} parent=62 // pred_fallthru
              _
            // Predicated region
            $region75: #{tpu_custom_call.1} parent=62 // pred_check
              _
            $region76: #{tpu_custom_call.1} parent=62 // pred_check_branch
              %298 = sbr.rel target = $region78
            $region77: #{tpu_custom_call.1} parent=62 // pred_region
              _
            $region78: #{tpu_custom_call.1} parent=62 // pred_fallthru
              _
          $region63: #{tpu_custom_call.1} parent=58 // pred_fallthru
            _
          %299 = vnop
        $region59: #{tpu_custom_call.1} parent=31 // pred_fallthru
          _
      $region32: #{tpu_custom_call.1} parent=5 // pred_fallthru
        _
      %p300 = scmp.le.s32.totalorder 1, %s12
      %p301 = scmp.lt.s32.totalorder %s12, 9
      %p302 = pnand %p300, %p301
      %p303 = pneg %p302
      // Predicated region
      $region79: #{tpu_custom_call.1} parent=5 // pred_check
        _
      $region80: #{tpu_custom_call.1} parent=5 // pred_check_branch
        %305 = sbr.rel (%p302) target = $region82
      $region81: #{tpu_custom_call.1} parent=5 // pred_region
        %s306 = ssub.s32 %s12, 1
        %s307 = sand.u32 %s46, 1
        %s308 = sand.u32 %s46, 1
        %s309 = smul.addr %s308, 32
        %s310 = scalar_lea.vmem [#allocation4], %s309
        // Predicated region
        $region83: #{tpu_custom_call.1} parent=81 // pred_check
          %p311 = pneg %p59
        $region84: #{tpu_custom_call.1} parent=81 // pred_check_branch
          %313 = sbr.rel (%p311) target = $region86
        $region85: #{tpu_custom_call.1} parent=81 // pred_region
          _
        $region86: #{tpu_custom_call.1} parent=81 // pred_fallthru
          _
        %s314 = sand.u32 %s74, 1
        %s315 = sand.u32 %s74, 1
        %s316 = smul.addr %s315, 32
        %s317 = scalar_lea.vmem [#allocation5], %s316
        // Predicated region
        $region87: #{tpu_custom_call.1} parent=81 // pred_check
          %p318 = pneg %p87
        $region88: #{tpu_custom_call.1} parent=81 // pred_check_branch
          %320 = sbr.rel (%p318) target = $region90
        $region89: #{tpu_custom_call.1} parent=81 // pred_region
          _
        $region90: #{tpu_custom_call.1} parent=81 // pred_fallthru
          _
        %s321 = sand.u32 %s46, 1
        %s322 = sand.u32 %s46, 1
        %s323 = smul.addr %s322, 32
        %s324 = scalar_lea.vmem [#allocation4], %s323
        %p325 = pneg %p59
        %p326 = pneg %p56
        %s327 = sand.u32 %s74, 1
        %s328 = sand.u32 %s74, 1
        %s329 = smul.addr %s328, 32
        %s330 = scalar_lea.vmem [#allocation5], %s329
        %p331 = pneg %p87
        %p332 = pneg %p84
        %p333 = pneg %p108
        %p334 = pneg %p105
        %p335 = pneg %p129
        %p336 = pneg %p126
        %p337 = pneg %p150
        %p338 = pneg %p147
        %p339 = pneg %p171
        %p340 = pneg %p168
        %p341 = pneg %p199
        %p342 = pneg %p196
        %s343 = smul.u32 32, %s23
        %p344 = scmp.lt.s32.totalorder %s22, 1
        %s345 = scalar_select %p344, %s22, 1
        %p346 = scmp.lt.s32.totalorder %s343, 63
        %s347 = scalar_select %p346, %s343, 63
        %s348 = smul.addr %s345, 64
        %s349 = sadd.s32 %s347, %s348
        %s350 = smul.addr %s349, 8
        %s351 = scalar_lea.vmem %s6, %s350
        %s352 = smul.u32 2, %s23
        %s353 = smul.u32 2, %s24
        %s354 = smul.u32 32, %s23
        %p355 = scmp.lt.s32.totalorder %s22, 1
        %s356 = scalar_select %p355, %s22, 1
        %p357 = scmp.lt.s32.totalorder %s354, 63
        %s358 = scalar_select %p357, %s354, 63
        %s359 = smul.addr %s356, 64
        %s360 = sadd.s32 %s358, %s359
        %s361 = smul.addr %s360, 8
        %s362 = scalar_lea.vmem %s6, %s361
        %s363 = smul.u32 32, %s23
        %p365 = scmp.eq.s32.totalorder %s24, 0
        // Predicated region
        $region91: #{tpu_custom_call.1} parent=81 // pred_check
          %p366 = pneg %p365
        $region92: #{tpu_custom_call.1} parent=81 // pred_check_branch
          %368 = sbr.rel (%p366) target = $region94
        $region93: #{tpu_custom_call.1} parent=81 // pred_region
          %vm369 = vcmask 7168
          %370 = vst.msk [vmem:[#allocation2] sm:$0xff] %vm369, -inf
          %371 = vst.msk [vmem:[#allocation2 + $0x8] sm:$0xff] %vm369, -inf
          %372 = vst.msk [vmem:[#allocation2 + $0x10] sm:$0xff] %vm369, -inf
          %373 = vst.msk [vmem:[#allocation2 + $0x18] sm:$0xff] %vm369, -inf
          %374 = vst.msk [vmem:[#allocation2 + $0x20] sm:$0xff] %vm369, -inf
          %375 = vst.msk [vmem:[#allocation2 + $0x28] sm:$0xff] %vm369, -inf
          %376 = vst.msk [vmem:[#allocation2 + $0x30] sm:$0xff] %vm369, -inf
          %377 = vst.msk [vmem:[#allocation2 + $0x38] sm:$0xff] %vm369, -inf
          %378 = vst.msk [vmem:[#allocation2 + $0x40] sm:$0xff] %vm369, -inf
          %379 = vst.msk [vmem:[#allocation2 + $0x48] sm:$0xff] %vm369, -inf
          %380 = vst.msk [vmem:[#allocation2 + $0x50] sm:$0xff] %vm369, -inf
          %381 = vst.msk [vmem:[#allocation2 + $0x58] sm:$0xff] %vm369, -inf
          %382 = vst.msk [vmem:[#allocation2 + $0x60] sm:$0xff] %vm369, -inf
          %383 = vst.msk [vmem:[#allocation2 + $0x68] sm:$0xff] %vm369, -inf
          %384 = vst.msk [vmem:[#allocation2 + $0x70] sm:$0xff] %vm369, -inf
          %385 = vst.msk [vmem:[#allocation2 + $0x78] sm:$0xff] %vm369, -inf
          %386 = vst.msk [vmem:[#allocation2 + $0x80] sm:$0xff] %vm369, -inf
          %387 = vst.msk [vmem:[#allocation2 + $0x88] sm:$0xff] %vm369, -inf
          %388 = vst.msk [vmem:[#allocation2 + $0x90] sm:$0xff] %vm369, -inf
          %389 = vst.msk [vmem:[#allocation2 + $0x98] sm:$0xff] %vm369, -inf
          %390 = vst.msk [vmem:[#allocation2 + $0xa0] sm:$0xff] %vm369, -inf
          %391 = vst.msk [vmem:[#allocation2 + $0xa8] sm:$0xff] %vm369, -inf
          %392 = vst.msk [vmem:[#allocation2 + $0xb0] sm:$0xff] %vm369, -inf
          %393 = vst.msk [vmem:[#allocation2 + $0xb8] sm:$0xff] %vm369, -inf
          %394 = vst.msk [vmem:[#allocation2 + $0xc0] sm:$0xff] %vm369, -inf
          %395 = vst.msk [vmem:[#allocation2 + $0xc8] sm:$0xff] %vm369, -inf
          %396 = vst.msk [vmem:[#allocation2 + $0xd0] sm:$0xff] %vm369, -inf
          %397 = vst.msk [vmem:[#allocation2 + $0xd8] sm:$0xff] %vm369, -inf
          %398 = vst.msk [vmem:[#allocation2 + $0xe0] sm:$0xff] %vm369, -inf
          %399 = vst.msk [vmem:[#allocation2 + $0xe8] sm:$0xff] %vm369, -inf
          %400 = vst.msk [vmem:[#allocation2 + $0xf0] sm:$0xff] %vm369, -inf
          %401 = vst.msk [vmem:[#allocation2 + $0xf8] sm:$0xff] %vm369, -inf
          %402 = vst.msk [vmem:[#allocation3] sm:$0xff] %vm369, 0.0
          %403 = vst.msk [vmem:[#allocation3 + $0x8] sm:$0xff] %vm369, 0.0
          %404 = vst.msk [vmem:[#allocation3 + $0x10] sm:$0xff] %vm369, 0.0
          %405 = vst.msk [vmem:[#allocation3 + $0x18] sm:$0xff] %vm369, 0.0
          %406 = vst.msk [vmem:[#allocation3 + $0x20] sm:$0xff] %vm369, 0.0
          %407 = vst.msk [vmem:[#allocation3 + $0x28] sm:$0xff] %vm369, 0.0
          %408 = vst.msk [vmem:[#allocation3 + $0x30] sm:$0xff] %vm369, 0.0
          %409 = vst.msk [vmem:[#allocation3 + $0x38] sm:$0xff] %vm369, 0.0
          %410 = vst.msk [vmem:[#allocation3 + $0x40] sm:$0xff] %vm369, 0.0
          %411 = vst.msk [vmem:[#allocation3 + $0x48] sm:$0xff] %vm369, 0.0
          %412 = vst.msk [vmem:[#allocation3 + $0x50] sm:$0xff] %vm369, 0.0
          %413 = vst.msk [vmem:[#allocation3 + $0x58] sm:$0xff] %vm369, 0.0
          %414 = vst.msk [vmem:[#allocation3 + $0x60] sm:$0xff] %vm369, 0.0
          %415 = vst.msk [vmem:[#allocation3 + $0x68] sm:$0xff] %vm369, 0.0
          %416 = vst.msk [vmem:[#allocation3 + $0x70] sm:$0xff] %vm369, 0.0
          %417 = vst.msk [vmem:[#allocation3 + $0x78] sm:$0xff] %vm369, 0.0
          %418 = vst.msk [vmem:[#allocation3 + $0x80] sm:$0xff] %vm369, 0.0
          %419 = vst.msk [vmem:[#allocation3 + $0x88] sm:$0xff] %vm369, 0.0
          %420 = vst.msk [vmem:[#allocation3 + $0x90] sm:$0xff] %vm369, 0.0
          %421 = vst.msk [vmem:[#allocation3 + $0x98] sm:$0xff] %vm369, 0.0
          %422 = vst.msk [vmem:[#allocation3 + $0xa0] sm:$0xff] %vm369, 0.0
          %423 = vst.msk [vmem:[#allocation3 + $0xa8] sm:$0xff] %vm369, 0.0
          %424 = vst.msk [vmem:[#allocation3 + $0xb0] sm:$0xff] %vm369, 0.0
          %425 = vst.msk [vmem:[#allocation3 + $0xb8] sm:$0xff] %vm369, 0.0
          %426 = vst.msk [vmem:[#allocation3 + $0xc0] sm:$0xff] %vm369, 0.0
          %427 = vst.msk [vmem:[#allocation3 + $0xc8] sm:$0xff] %vm369, 0.0
          %428 = vst.msk [vmem:[#allocation3 + $0xd0] sm:$0xff] %vm369, 0.0
          %429 = vst.msk [vmem:[#allocation3 + $0xd8] sm:$0xff] %vm369, 0.0
          %430 = vst.msk [vmem:[#allocation3 + $0xe0] sm:$0xff] %vm369, 0.0
          %431 = vst.msk [vmem:[#allocation3 + $0xe8] sm:$0xff] %vm369, 0.0
          %432 = vst.msk [vmem:[#allocation3 + $0xf0] sm:$0xff] %vm369, 0.0
          %433 = vst.msk [vmem:[#allocation3 + $0xf8] sm:$0xff] %vm369, 0.0
        $region94: #{tpu_custom_call.1} parent=81 // pred_fallthru
          _
        %v434 = vld [vmem:[%s310] sm:$0xff]
        %v435 = vld [vmem:[%s310 + $0x8] sm:$0xff]
        %v436 = vld [vmem:[%s310 + $0x10] sm:$0xff]
        %v437 = vld [vmem:[%s310 + $0x18] sm:$0xff]
        %v438 = vld [vmem:[%s317] sm:$0xff]
        %v439 = vld [vmem:[%s317 + $0x8] sm:$0xff]
        %v440 = vld [vmem:[%s317 + $0x10] sm:$0xff]
        %v441 = vld [vmem:[%s317 + $0x18] sm:$0xff]
        %442 = vxpose.xlu0.b32.start [1/16] %v434, 128
        %443 = vxpose.xlu0.b32.cont [2/16] %v436, 128
        %444 = vxpose.xlu0.b32.cont [3/16] 0.0, 128
        %445 = vxpose.xlu0.b32.cont [4/16] 0.0, 128
        %446 = vxpose.xlu0.b32.cont [5/16] 0.0, 128
        %447 = vxpose.xlu0.b32.cont [6/16] 0.0, 128
        %448 = vxpose.xlu0.b32.cont [7/16] 0.0, 128
        %449 = vxpose.xlu0.b32.cont [8/16] 0.0, 128
        %450 = vxpose.xlu0.b32.cont [9/16] 0.0, 128
        %451 = vxpose.xlu0.b32.cont [10/16] 0.0, 128
        %452 = vxpose.xlu0.b32.cont [11/16] 0.0, 128
        %453 = vxpose.xlu0.b32.cont [12/16] 0.0, 128
        %454 = vxpose.xlu0.b32.cont [13/16] 0.0, 128
        %455 = vxpose.xlu0.b32.cont [14/16] 0.0, 128
        %456 = vxpose.xlu0.b32.cont [15/16] 0.0, 128
        %457 = vxpose.xlu0.b32.end [16/16] 0.0, 128
        %v458 = vpop.trf.xlu0
        %v459 = vpop.trf.xlu0
        %v460 = vpop.trf.xlu0
        %v461 = vpop.trf.xlu0
        %v462 = vpop.trf.xlu0
        %v463 = vpop.trf.xlu0
        %v464 = vpop.trf.xlu0
        %v465 = vpop.trf.xlu0
        %v466 = vpop.trf.xlu0
        %v467 = vpop.trf.xlu0
        %v468 = vpop.trf.xlu0
        %v469 = vpop.trf.xlu0
        %v470 = vpop.trf.xlu0
        %v471 = vpop.trf.xlu0
        %v472 = vpop.trf.xlu0
        %v473 = vpop.trf.xlu0
        %474 = vxpose.xlu0.b32.start [1/16] %v435, 128
        %475 = vxpose.xlu0.b32.cont [2/16] %v437, 128
        %476 = vxpose.xlu0.b32.cont [3/16] 0.0, 128
        %477 = vxpose.xlu0.b32.cont [4/16] 0.0, 128
        %478 = vxpose.xlu0.b32.cont [5/16] 0.0, 128
        %479 = vxpose.xlu0.b32.cont [6/16] 0.0, 128
        %480 = vxpose.xlu0.b32.cont [7/16] 0.0, 128
        %481 = vxpose.xlu0.b32.cont [8/16] 0.0, 128
        %482 = vxpose.xlu0.b32.cont [9/16] 0.0, 128
        %483 = vxpose.xlu0.b32.cont [10/16] 0.0, 128
        %484 = vxpose.xlu0.b32.cont [11/16] 0.0, 128
        %485 = vxpose.xlu0.b32.cont [12/16] 0.0, 128
        %486 = vxpose.xlu0.b32.cont [13/16] 0.0, 128
        %487 = vxpose.xlu0.b32.cont [14/16] 0.0, 128
        %488 = vxpose.xlu0.b32.cont [15/16] 0.0, 128
        %489 = vxpose.xlu0.b32.end [16/16] 0.0, 128
        %v490 = vpop.trf.xlu0
        %v491 = vpop.trf.xlu0
        %v492 = vpop.trf.xlu0
        %v493 = vpop.trf.xlu0
        %v494 = vpop.trf.xlu0
        %v495 = vpop.trf.xlu0
        %v496 = vpop.trf.xlu0
        %v497 = vpop.trf.xlu0
        %v498 = vpop.trf.xlu0
        %v499 = vpop.trf.xlu0
        %v500 = vpop.trf.xlu0
        %v501 = vpop.trf.xlu0
        %v502 = vpop.trf.xlu0
        %v503 = vpop.trf.xlu0
        %v504 = vpop.trf.xlu0
        %v505 = vpop.trf.xlu0
        %v506 = vld [vmem:[%s2] sm:$0xff]
        %v507 = vld [vmem:[%s2 + $0x8] sm:$0xff]
        %v508 = vld [vmem:[%s3] sm:$0x1]
        %v510 = vlaneseq
        %v511 = vshrl.u32 %v510, 7
        %v512 = vsub.s32 0, %v511
        %v513 = vrot.slane %v508, %v512
        %vm515 = vcmask 130048
        %v517 = vsel %vm515, %v458, 0
        %v520 = vsel %vm515, %v459, 0
        %v523 = vsel %vm515, %v460, 0
        %v526 = vsel %vm515, %v461, 0
        %v529 = vsel %vm515, %v462, 0
        %v532 = vsel %vm515, %v463, 0
        %v535 = vsel %vm515, %v464, 0
        %v538 = vsel %vm515, %v465, 0
        %v541 = vsel %vm515, %v466, 0
        %v544 = vsel %vm515, %v467, 0
        %v547 = vsel %vm515, %v468, 0
        %v550 = vsel %vm515, %v469, 0
        %v553 = vsel %vm515, %v470, 0
        %v556 = vsel %vm515, %v471, 0
        %v559 = vsel %vm515, %v472, 0
        %v562 = vsel %vm515, %v473, 0
        %v565 = vsel %vm515, %v490, 0
        %v568 = vsel %vm515, %v491, 0
        %v571 = vsel %vm515, %v492, 0
        %v574 = vsel %vm515, %v493, 0
        %v577 = vsel %vm515, %v494, 0
        %v580 = vsel %vm515, %v495, 0
        %v583 = vsel %vm515, %v496, 0
        %v586 = vsel %vm515, %v497, 0
        %v589 = vsel %vm515, %v498, 0
        %v592 = vsel %vm515, %v499, 0
        %v595 = vsel %vm515, %v500, 0
        %v598 = vsel %vm515, %v501, 0
        %v601 = vsel %vm515, %v502, 0
        %v604 = vsel %vm515, %v503, 0
        %v607 = vsel %vm515, %v504, 0
        %v610 = vsel %vm515, %v505, 0
        %612 = vmatprep.subr.mxu0 0.0
        %613 = vmatpush1.msra.mxu0 %v506
        %614 = vmatprep.subr.mxu0 0.0
        %615 = vmatpush1.msra.mxu0 %v507
        %616 = vmatprep.subr.mxu0 0.0
        %617 = vmatpush1.msra.mxu0 0.0
        %618 = vmatprep.subr.mxu0 0.0
        %619 = vmatpush1.msra.mxu0 0.0
        %620 = vmatprep.subr.mxu0 0.0
        %621 = vmatpush1.msra.mxu0 0.0
        %622 = vmatprep.subr.mxu0 0.0
        %623 = vmatpush1.msra.mxu0 0.0
        %624 = vmatprep.subr.mxu0 0.0
        %625 = vmatpush1.msra.mxu0 0.0
        %626 = vmatprep.subr.mxu0 0.0
        %627 = vmatpush1.msra.mxu0 0.0
        %628 = vmatprep.subr.mxu0 0.0
        %629 = vmatpush1.msra.mxu0 0.0
        %630 = vmatprep.subr.mxu0 0.0
        %631 = vmatpush1.msra.mxu0 0.0
        %632 = vmatprep.subr.mxu0 0.0
        %633 = vmatpush1.msra.mxu0 0.0
        %634 = vmatprep.subr.mxu0 0.0
        %635 = vmatpush1.msra.mxu0 0.0
        %636 = vmatprep.subr.mxu0 0.0
        %637 = vmatpush1.msra.mxu0 0.0
        %638 = vmatprep.subr.mxu0 0.0
        %639 = vmatpush1.msra.mxu0 0.0
        %640 = vmatprep.subr.mxu0 0.0
        %641 = vmatpush1.msra.mxu0 0.0
        %642 = vmatprep.subr.mxu0 0.0
        %643 = vmatpush1.msra.mxu0 0.0
        %644 = vmatprep.subr.mxu0 0.0
        %645 = vmatpush1.msra.mxu0 0.0
        %646 = vmatprep.subr.mxu0 0.0
        %647 = vmatpush1.msra.mxu0 0.0
        %648 = vmatprep.subr.mxu0 0.0
        %649 = vmatpush1.msra.mxu0 0.0
        %650 = vmatprep.subr.mxu0 0.0
        %651 = vmatpush1.msra.mxu0 0.0
        %652 = vmatprep.subr.mxu0 0.0
        %653 = vmatpush1.msra.mxu0 0.0
        %654 = vmatprep.subr.mxu0 0.0
        %655 = vmatpush1.msra.mxu0 0.0
        %656 = vmatprep.subr.mxu0 0.0
        %657 = vmatpush1.msra.mxu0 0.0
        %658 = vmatprep.subr.mxu0 0.0
        %659 = vmatpush1.msra.mxu0 0.0
        %660 = vmatprep.subr.mxu0 0.0
        %661 = vmatpush1.msra.mxu0 0.0
        %662 = vmatprep.subr.mxu0 0.0
        %663 = vmatpush1.msra.mxu0 0.0
        %664 = vmatprep.subr.mxu0 0.0
        %665 = vmatpush1.msra.mxu0 0.0
        %666 = vmatprep.subr.mxu0 0.0
        %667 = vmatpush1.msra.mxu0 0.0
        %668 = vmatprep.subr.mxu0 0.0
        %669 = vmatpush1.msra.mxu0 0.0
        %670 = vmatprep.subr.mxu0 0.0
        %671 = vmatpush1.msra.mxu0 0.0
        %672 = vmatprep.subr.mxu0 0.0
        %673 = vmatpush1.msra.mxu0 0.0
        %674 = vmatprep.subr.mxu0 0.0
        %675 = vmatpush1.msra.mxu0 0.0
        %676 = vmatprep.mubr.f32.mxu0 0.0
        %677 = vmatmul.mubr.f32.gmra.mrb[0].mxu0 %v517
        %v678 = vpop.f32.mrb[0].mxu0
        %v679 = vadd.f32 %v513, %v678
        %v680 = vpop.f32.mrb[0].mxu0
        %681 = vmatprep.mubr.f32.mxu0 0.0
        %682 = vmatmul.mubr.f32.gmra.mrb[0].mxu0 %v520
        %v683 = vpop.f32.mrb[0].mxu0
        %v684 = vadd.f32 %v513, %v683
        %v685 = vpop.f32.mrb[0].mxu0
        %686 = vmatprep.mubr.f32.mxu0 0.0
        %687 = vmatmul.mubr.f32.gmra.mrb[0].mxu0 %v523
        %v688 = vpop.f32.mrb[0].mxu0
        %v689 = vadd.f32 %v513, %v688
        %v690 = vpop.f32.mrb[0].mxu0
        %691 = vmatprep.mubr.f32.mxu0 0.0
        %692 = vmatmul.mubr.f32.gmra.mrb[0].mxu0 %v526
        %v693 = vpop.f32.mrb[0].mxu0
        %v694 = vadd.f32 %v513, %v693
        %v695 = vpop.f32.mrb[0].mxu0
        %696 = vmatprep.mubr.f32.mxu0 0.0
        %697 = vmatmul.mubr.f32.gmra.mrb[0].mxu0 %v529
        %v698 = vpop.f32.mrb[0].mxu0
        %v699 = vadd.f32 %v513, %v698
        %v700 = vpop.f32.mrb[0].mxu0
        %701 = vmatprep.mubr.f32.mxu0 0.0
        %702 = vmatmul.mubr.f32.gmra.mrb[0].mxu0 %v532
        %v703 = vpop.f32.mrb[0].mxu0
        %v704 = vadd.f32 %v513, %v703
        %v705 = vpop.f32.mrb[0].mxu0
        %706 = vmatprep.mubr.f32.mxu0 0.0
        %707 = vmatmul.mubr.f32.gmra.mrb[0].mxu0 %v535
        %v708 = vpop.f32.mrb[0].mxu0
        %v709 = vadd.f32 %v513, %v708
        %v710 = vpop.f32.mrb[0].mxu0
        %711 = vmatprep.mubr.f32.mxu0 0.0
        %712 = vmatmul.mubr.f32.gmra.mrb[0].mxu0 %v538
        %v713 = vpop.f32.mrb[0].mxu0
        %v714 = vadd.f32 %v513, %v713
        %v715 = vpop.f32.mrb[0].mxu0
        %716 = vmatprep.mubr.f32.mxu0 0.0
        %717 = vmatmul.mubr.f32.gmra.mrb[0].mxu0 %v541
        %v718 = vpop.f32.mrb[0].mxu0
        %v719 = vadd.f32 %v513, %v718
        %v720 = vpop.f32.mrb[0].mxu0
        %721 = vmatprep.mubr.f32.mxu0 0.0
        %722 = vmatmul.mubr.f32.gmra.mrb[0].mxu0 %v544
        %v723 = vpop.f32.mrb[0].mxu0
        %v724 = vadd.f32 %v513, %v723
        %v725 = vpop.f32.mrb[0].mxu0
        %726 = vmatprep.mubr.f32.mxu0 0.0
        %727 = vmatmul.mubr.f32.gmra.mrb[0].mxu0 %v547
        %v728 = vpop.f32.mrb[0].mxu0
        %v729 = vadd.f32 %v513, %v728
        %v730 = vpop.f32.mrb[0].mxu0
        %731 = vmatprep.mubr.f32.mxu0 0.0
        %732 = vmatmul.mubr.f32.gmra.mrb[0].mxu0 %v550
        %v733 = vpop.f32.mrb[0].mxu0
        %v734 = vadd.f32 %v513, %v733
        %v735 = vpop.f32.mrb[0].mxu0
        %736 = vmatprep.mubr.f32.mxu0 0.0
        %737 = vmatmul.mubr.f32.gmra.mrb[0].mxu0 %v553
        %v738 = vpop.f32.mrb[0].mxu0
        %v739 = vadd.f32 %v513, %v738
        %v740 = vpop.f32.mrb[0].mxu0
        %741 = vmatprep.mubr.f32.mxu0 0.0
        %742 = vmatmul.mubr.f32.gmra.mrb[0].mxu0 %v556
        %v743 = vpop.f32.mrb[0].mxu0
        %v744 = vadd.f32 %v513, %v743
        %v745 = vpop.f32.mrb[0].mxu0
        %746 = vmatprep.mubr.f32.mxu0 0.0
        %747 = vmatmul.mubr.f32.gmra.mrb[0].mxu0 %v559
        %v748 = vpop.f32.mrb[0].mxu0
        %v749 = vadd.f32 %v513, %v748
        %v750 = vpop.f32.mrb[0].mxu0
        %751 = vmatprep.mubr.f32.mxu0 0.0
        %752 = vmatmul.mubr.f32.gmra.mrb[0].mxu0 %v562
        %v753 = vpop.f32.mrb[0].mxu0
        %v754 = vadd.f32 %v513, %v753
        %v755 = vpop.f32.mrb[0].mxu0
        %756 = vmatprep.mubr.f32.mxu0 0.0
        %757 = vmatmul.mubr.f32.gmra.mrb[0].mxu0 %v565
        %v758 = vpop.f32.mrb[0].mxu0
        %v759 = vadd.f32 %v513, %v758
        %v760 = vpop.f32.mrb[0].mxu0
        %761 = vmatprep.mubr.f32.mxu0 0.0
        %762 = vmatmul.mubr.f32.gmra.mrb[0].mxu0 %v568
        %v763 = vpop.f32.mrb[0].mxu0
        %v764 = vadd.f32 %v513, %v763
        %v765 = vpop.f32.mrb[0].mxu0
        %766 = vmatprep.mubr.f32.mxu0 0.0
        %767 = vmatmul.mubr.f32.gmra.mrb[0].mxu0 %v571
        %v768 = vpop.f32.mrb[0].mxu0
        %v769 = vadd.f32 %v513, %v768
        %v770 = vpop.f32.mrb[0].mxu0
        %771 = vmatprep.mubr.f32.mxu0 0.0
        %772 = vmatmul.mubr.f32.gmra.mrb[0].mxu0 %v574
        %v773 = vpop.f32.mrb[0].mxu0
        %v774 = vadd.f32 %v513, %v773
        %v775 = vpop.f32.mrb[0].mxu0
        %776 = vmatprep.mubr.f32.mxu0 0.0
        %777 = vmatmul.mubr.f32.gmra.mrb[0].mxu0 %v577
        %v778 = vpop.f32.mrb[0].mxu0
        %v779 = vadd.f32 %v513, %v778
        %v780 = vpop.f32.mrb[0].mxu0
        %781 = vmatprep.mubr.f32.mxu0 0.0
        %782 = vmatmul.mubr.f32.gmra.mrb[0].mxu0 %v580
        %v783 = vpop.f32.mrb[0].mxu0
        %v784 = vadd.f32 %v513, %v783
        %v785 = vpop.f32.mrb[0].mxu0
        %786 = vmatprep.mubr.f32.mxu0 0.0
        %787 = vmatmul.mubr.f32.gmra.mrb[0].mxu0 %v583
        %v788 = vpop.f32.mrb[0].mxu0
        %v789 = vadd.f32 %v513, %v788
        %v790 = vpop.f32.mrb[0].mxu0
        %791 = vmatprep.mubr.f32.mxu0 0.0
        %792 = vmatmul.mubr.f32.gmra.mrb[0].mxu0 %v586
        %v793 = vpop.f32.mrb[0].mxu0
        %v794 = vadd.f32 %v513, %v793
        %v795 = vpop.f32.mrb[0].mxu0
        %796 = vmatprep.mubr.f32.mxu0 0.0
        %797 = vmatmul.mubr.f32.gmra.mrb[0].mxu0 %v589
        %v798 = vpop.f32.mrb[0].mxu0
        %v799 = vadd.f32 %v513, %v798
        %v800 = vpop.f32.mrb[0].mxu0
        %801 = vmatprep.mubr.f32.mxu0 0.0
        %802 = vmatmul.mubr.f32.gmra.mrb[0].mxu0 %v592
        %v803 = vpop.f32.mrb[0].mxu0
        %v804 = vadd.f32 %v513, %v803
        %v805 = vpop.f32.mrb[0].mxu0
        %806 = vmatprep.mubr.f32.mxu0 0.0
        %807 = vmatmul.mubr.f32.gmra.mrb[0].mxu0 %v595
        %v808 = vpop.f32.mrb[0].mxu0
        %v809 = vadd.f32 %v513, %v808
        %v810 = vpop.f32.mrb[0].mxu0
        %811 = vmatprep.mubr.f32.mxu0 0.0
        %812 = vmatmul.mubr.f32.gmra.mrb[0].mxu0 %v598
        %v813 = vpop.f32.mrb[0].mxu0
        %v814 = vadd.f32 %v513, %v813
        %v815 = vpop.f32.mrb[0].mxu0
        %816 = vmatprep.mubr.f32.mxu0 0.0
        %817 = vmatmul.mubr.f32.gmra.mrb[0].mxu0 %v601
        %v818 = vpop.f32.mrb[0].mxu0
        %v819 = vadd.f32 %v513, %v818
        %v820 = vpop.f32.mrb[0].mxu0
        %821 = vmatprep.mubr.f32.mxu0 0.0
        %822 = vmatmul.mubr.f32.gmra.mrb[0].mxu0 %v604
        %v823 = vpop.f32.mrb[0].mxu0
        %v824 = vadd.f32 %v513, %v823
        %v825 = vpop.f32.mrb[0].mxu0
        %826 = vmatprep.mubr.f32.mxu0 0.0
        %827 = vmatmul.mubr.f32.gmra.mrb[0].mxu0 %v607
        %v828 = vpop.f32.mrb[0].mxu0
        %v829 = vadd.f32 %v513, %v828
        %v830 = vpop.f32.mrb[0].mxu0
        %831 = vmatprep.mubr.f32.mxu0 0.0
        %832 = vmatmul.mubr.f32.gmra.mrb[0].mxu0 %v610
        %v833 = vpop.f32.mrb[0].mxu0
        %v834 = vadd.f32 %v513, %v833
        %v835 = vpop.f32.mrb[0].mxu0
        %836 = vdwg.mxu0
        %v837 = vpack.c.bf16 %v684, %v679
        %v838 = vpack.c.bf16 %v694, %v689
        %v839 = vpack.c.bf16 %v704, %v699
        %v840 = vpack.c.bf16 %v714, %v709
        %v841 = vpack.c.bf16 %v724, %v719
        %v842 = vpack.c.bf16 %v734, %v729
        %v843 = vpack.c.bf16 %v744, %v739
        %v844 = vpack.c.bf16 %v754, %v749
        %v845 = vpack.c.bf16 %v764, %v759
        %v846 = vpack.c.bf16 %v774, %v769
        %v847 = vpack.c.bf16 %v784, %v779
        %v848 = vpack.c.bf16 %v794, %v789
        %v849 = vpack.c.bf16 %v804, %v799
        %v850 = vpack.c.bf16 %v814, %v809
        %v851 = vpack.c.bf16 %v824, %v819
        %v852 = vpack.c.bf16 %v834, %v829
        %v853 = vld [vmem:[%s4] sm:$0xff]
        %v854 = vld [vmem:[%s4 + $0x8] sm:$0xff]
        %v855 = vld [vmem:[%s4 + $0x10] sm:$0xff]
        %v856 = vld [vmem:[%s4 + $0x18] sm:$0xff]
        %v857 = vld [vmem:[%s4 + $0x20] sm:$0xff]
        %v858 = vld [vmem:[%s4 + $0x28] sm:$0xff]
        %v859 = vld [vmem:[%s4 + $0x30] sm:$0xff]
        %v860 = vld [vmem:[%s4 + $0x38] sm:$0xff]
        %v861 = vld [vmem:[%s4 + $0x40] sm:$0xff]
        %v862 = vld [vmem:[%s4 + $0x48] sm:$0xff]
        %v863 = vld [vmem:[%s4 + $0x50] sm:$0xff]
        %v864 = vld [vmem:[%s4 + $0x58] sm:$0xff]
        %v865 = vld [vmem:[%s4 + $0x60] sm:$0xff]
        %v866 = vld [vmem:[%s4 + $0x68] sm:$0xff]
        %v867 = vld [vmem:[%s4 + $0x70] sm:$0xff]
        %v868 = vld [vmem:[%s4 + $0x78] sm:$0xff]
        %v869 = vld [vmem:[%s5] sm:$0xff]
        %v870 = vld [vmem:[%s5 + $0x8] sm:$0xff]
        %v871 = vld [vmem:[%s5 + $0x10] sm:$0xff]
        %v872 = vld [vmem:[%s5 + $0x18] sm:$0xff]
        %v873 = vld [vmem:[%s5 + $0x20] sm:$0xff]
        %v874 = vld [vmem:[%s5 + $0x28] sm:$0xff]
        %v875 = vld [vmem:[%s5 + $0x30] sm:$0xff]
        %v876 = vld [vmem:[%s5 + $0x38] sm:$0xff]
        %v877 = vld [vmem:[%s5 + $0x40] sm:$0xff]
        %v878 = vld [vmem:[%s5 + $0x48] sm:$0xff]
        %v879 = vld [vmem:[%s5 + $0x50] sm:$0xff]
        %v880 = vld [vmem:[%s5 + $0x58] sm:$0xff]
        %v881 = vld [vmem:[%s5 + $0x60] sm:$0xff]
        %v882 = vld [vmem:[%s5 + $0x68] sm:$0xff]
        %v883 = vld [vmem:[%s5 + $0x70] sm:$0xff]
        %v884 = vld [vmem:[%s5 + $0x78] sm:$0xff]
        %886 = vset.pattern.permute.xlu0 0
        %887 = vperm.xlu0 %886, %v869
        %v888 = vpop.permute.xlu0 %887
        %891 = vset.pattern.permute.xlu0 0
        %892 = vperm.xlu0 %891, %v870
        %v893 = vpop.permute.xlu0 %892
        %896 = vset.pattern.permute.xlu0 0
        %897 = vperm.xlu0 %896, %v871
        %v898 = vpop.permute.xlu0 %897
        %901 = vset.pattern.permute.xlu0 0
        %902 = vperm.xlu0 %901, %v872
        %v903 = vpop.permute.xlu0 %902
        %906 = vset.pattern.permute.xlu0 0
        %907 = vperm.xlu0 %906, %v873
        %v908 = vpop.permute.xlu0 %907
        %911 = vset.pattern.permute.xlu0 0
        %912 = vperm.xlu0 %911, %v874
        %v913 = vpop.permute.xlu0 %912
        %916 = vset.pattern.permute.xlu0 0
        %917 = vperm.xlu0 %916, %v875
        %v918 = vpop.permute.xlu0 %917
        %921 = vset.pattern.permute.xlu0 0
        %922 = vperm.xlu0 %921, %v876
        %v923 = vpop.permute.xlu0 %922
        %926 = vset.pattern.permute.xlu0 0
        %927 = vperm.xlu0 %926, %v877
        %v928 = vpop.permute.xlu0 %927
        %931 = vset.pattern.permute.xlu0 0
        %932 = vperm.xlu0 %931, %v878
        %v933 = vpop.permute.xlu0 %932
        %936 = vset.pattern.permute.xlu0 0
        %937 = vperm.xlu0 %936, %v879
        %v938 = vpop.permute.xlu0 %937
        %941 = vset.pattern.permute.xlu0 0
        %942 = vperm.xlu0 %941, %v880
        %v943 = vpop.permute.xlu0 %942
        %946 = vset.pattern.permute.xlu0 0
        %947 = vperm.xlu0 %946, %v881
        %v948 = vpop.permute.xlu0 %947
        %951 = vset.pattern.permute.xlu0 0
        %952 = vperm.xlu0 %951, %v882
        %v953 = vpop.permute.xlu0 %952
        %956 = vset.pattern.permute.xlu0 0
        %957 = vperm.xlu0 %956, %v883
        %v958 = vpop.permute.xlu0 %957
        %961 = vset.pattern.permute.xlu0 0
        %962 = vperm.xlu0 %961, %v884
        %v963 = vpop.permute.xlu0 %962
        %v966 = vsel %vm515, %v853, 0
        %v969 = vsel %vm515, %v854, 0
        %v972 = vsel %vm515, %v855, 0
        %v975 = vsel %vm515, %v856, 0
        %v978 = vsel %vm515, %v857, 0
        %v981 = vsel %vm515, %v858, 0
        %v984 = vsel %vm515, %v859, 0
        %v987 = vsel %vm515, %v860, 0
        %v990 = vsel %vm515, %v861, 0
        %v993 = vsel %vm515, %v862, 0
        %v996 = vsel %vm515, %v863, 0
        %v999 = vsel %vm515, %v864, 0
        %v1002 = vsel %vm515, %v865, 0
        %v1005 = vsel %vm515, %v866, 0
        %v1008 = vsel %vm515, %v867, 0
        %v1011 = vsel %vm515, %v868, 0
        %1013 = vmatprep.subr.mxu0 %v439
        %1014 = vmatpush1.msra.mxu0 %v438
        %1015 = vmatprep.subr.mxu0 %v441
        %1016 = vmatpush1.msra.mxu0 %v440
        %1017 = vmatprep.subr.mxu0 0.0
        %1018 = vmatpush1.msra.mxu0 0.0
        %1019 = vmatprep.subr.mxu0 0.0
        %1020 = vmatpush1.msra.mxu0 0.0
        %1021 = vmatprep.subr.mxu0 0.0
        %1022 = vmatpush1.msra.mxu0 0.0
        %1023 = vmatprep.subr.mxu0 0.0
        %1024 = vmatpush1.msra.mxu0 0.0
        %1025 = vmatprep.subr.mxu0 0.0
        %1026 = vmatpush1.msra.mxu0 0.0
        %1027 = vmatprep.subr.mxu0 0.0
        %1028 = vmatpush1.msra.mxu0 0.0
        %1029 = vmatprep.subr.mxu0 0.0
        %1030 = vmatpush1.msra.mxu0 0.0
        %1031 = vmatprep.subr.mxu0 0.0
        %1032 = vmatpush1.msra.mxu0 0.0
        %1033 = vmatprep.subr.mxu0 0.0
        %1034 = vmatpush1.msra.mxu0 0.0
        %1035 = vmatprep.subr.mxu0 0.0
        %1036 = vmatpush1.msra.mxu0 0.0
        %1037 = vmatprep.subr.mxu0 0.0
        %1038 = vmatpush1.msra.mxu0 0.0
        %1039 = vmatprep.subr.mxu0 0.0
        %1040 = vmatpush1.msra.mxu0 0.0
        %1041 = vmatprep.subr.mxu0 0.0
        %1042 = vmatpush1.msra.mxu0 0.0
        %1043 = vmatprep.subr.mxu0 0.0
        %1044 = vmatpush1.msra.mxu0 0.0
        %1045 = vmatprep.subr.mxu0 0.0
        %1046 = vmatpush1.msra.mxu0 0.0
        %1047 = vmatprep.subr.mxu0 0.0
        %1048 = vmatpush1.msra.mxu0 0.0
        %1049 = vmatprep.subr.mxu0 0.0
        %1050 = vmatpush1.msra.mxu0 0.0
        %1051 = vmatprep.subr.mxu0 0.0
        %1052 = vmatpush1.msra.mxu0 0.0
        %1053 = vmatprep.subr.mxu0 0.0
        %1054 = vmatpush1.msra.mxu0 0.0
        %1055 = vmatprep.subr.mxu0 0.0
        %1056 = vmatpush1.msra.mxu0 0.0
        %1057 = vmatprep.subr.mxu0 0.0
        %1058 = vmatpush1.msra.mxu0 0.0
        %1059 = vmatprep.subr.mxu0 0.0
        %1060 = vmatpush1.msra.mxu0 0.0
        %1061 = vmatprep.subr.mxu0 0.0
        %1062 = vmatpush1.msra.mxu0 0.0
        %1063 = vmatprep.subr.mxu0 0.0
        %1064 = vmatpush1.msra.mxu0 0.0
        %1065 = vmatprep.subr.mxu0 0.0
        %1066 = vmatpush1.msra.mxu0 0.0
        %1067 = vmatprep.subr.mxu0 0.0
        %1068 = vmatpush1.msra.mxu0 0.0
        %1069 = vmatprep.subr.mxu0 0.0
        %1070 = vmatpush1.msra.mxu0 0.0
        %1071 = vmatprep.subr.mxu0 0.0
        %1072 = vmatpush1.msra.mxu0 0.0
        %1073 = vmatprep.subr.mxu0 0.0
        %1074 = vmatpush1.msra.mxu0 0.0
        %1075 = vmatprep.subr.mxu0 0.0
        %1076 = vmatpush1.msra.mxu0 0.0
        %1077 = vmatprep.mubr.f32.mxu0 0.0
        %1078 = vmatmul.mubr.f32.gmra.mrb[0].mxu0 %v966
        %v1079 = vpop.f32.mrb[0].mxu0
        %v1080 = vadd.f32 %v888, %v1079
        %v1081 = vpop.f32.mrb[0].mxu0
        %v1082 = vadd.f32 %v888, %v1081
        %1083 = vmatprep.mubr.f32.mxu0 0.0
        %1084 = vmatmul.mubr.f32.gmra.mrb[0].mxu0 %v969
        %v1085 = vpop.f32.mrb[0].mxu0
        %v1086 = vadd.f32 %v893, %v1085
        %v1087 = vpop.f32.mrb[0].mxu0
        %v1088 = vadd.f32 %v893, %v1087
        %1089 = vmatprep.mubr.f32.mxu0 0.0
        %1090 = vmatmul.mubr.f32.gmra.mrb[0].mxu0 %v972
        %v1091 = vpop.f32.mrb[0].mxu0
        %v1092 = vadd.f32 %v898, %v1091
        %v1093 = vpop.f32.mrb[0].mxu0
        %v1094 = vadd.f32 %v898, %v1093
        %1095 = vmatprep.mubr.f32.mxu0 0.0
        %1096 = vmatmul.mubr.f32.gmra.mrb[0].mxu0 %v975
        %v1097 = vpop.f32.mrb[0].mxu0
        %v1098 = vadd.f32 %v903, %v1097
        %v1099 = vpop.f32.mrb[0].mxu0
        %v1100 = vadd.f32 %v903, %v1099
        %1101 = vmatprep.mubr.f32.mxu0 0.0
        %1102 = vmatmul.mubr.f32.gmra.mrb[0].mxu0 %v978
        %v1103 = vpop.f32.mrb[0].mxu0
        %v1104 = vadd.f32 %v908, %v1103
        %v1105 = vpop.f32.mrb[0].mxu0
        %v1106 = vadd.f32 %v908, %v1105
        %1107 = vmatprep.mubr.f32.mxu0 0.0
        %1108 = vmatmul.mubr.f32.gmra.mrb[0].mxu0 %v981
        %v1109 = vpop.f32.mrb[0].mxu0
        %v1110 = vadd.f32 %v913, %v1109
        %v1111 = vpop.f32.mrb[0].mxu0
        %v1112 = vadd.f32 %v913, %v1111
        %1113 = vmatprep.mubr.f32.mxu0 0.0
        %1114 = vmatmul.mubr.f32.gmra.mrb[0].mxu0 %v984
        %v1115 = vpop.f32.mrb[0].mxu0
        %v1116 = vadd.f32 %v918, %v1115
        %v1117 = vpop.f32.mrb[0].mxu0
        %v1118 = vadd.f32 %v918, %v1117
        %1119 = vmatprep.mubr.f32.mxu0 0.0
        %1120 = vmatmul.mubr.f32.gmra.mrb[0].mxu0 %v987
        %v1121 = vpop.f32.mrb[0].mxu0
        %v1122 = vadd.f32 %v923, %v1121
        %v1123 = vpop.f32.mrb[0].mxu0
        %v1124 = vadd.f32 %v923, %v1123
        %1125 = vmatprep.mubr.f32.mxu0 0.0
        %1126 = vmatmul.mubr.f32.gmra.mrb[0].mxu0 %v990
        %v1127 = vpop.f32.mrb[0].mxu0
        %v1128 = vadd.f32 %v928, %v1127
        %v1129 = vpop.f32.mrb[0].mxu0
        %v1130 = vadd.f32 %v928, %v1129
        %1131 = vmatprep.mubr.f32.mxu0 0.0
        %1132 = vmatmul.mubr.f32.gmra.mrb[0].mxu0 %v993
        %v1133 = vpop.f32.mrb[0].mxu0
        %v1134 = vadd.f32 %v933, %v1133
        %v1135 = vpop.f32.mrb[0].mxu0
        %v1136 = vadd.f32 %v933, %v1135
        %1137 = vmatprep.mubr.f32.mxu0 0.0
        %1138 = vmatmul.mubr.f32.gmra.mrb[0].mxu0 %v996
        %v1139 = vpop.f32.mrb[0].mxu0
        %v1140 = vadd.f32 %v938, %v1139
        %v1141 = vpop.f32.mrb[0].mxu0
        %v1142 = vadd.f32 %v938, %v1141
        %1143 = vmatprep.mubr.f32.mxu0 0.0
        %1144 = vmatmul.mubr.f32.gmra.mrb[0].mxu0 %v999
        %v1145 = vpop.f32.mrb[0].mxu0
        %v1146 = vadd.f32 %v943, %v1145
        %v1147 = vpop.f32.mrb[0].mxu0
        %v1148 = vadd.f32 %v943, %v1147
        %1149 = vmatprep.mubr.f32.mxu0 0.0
        %1150 = vmatmul.mubr.f32.gmra.mrb[0].mxu0 %v1002
        %v1151 = vpop.f32.mrb[0].mxu0
        %v1152 = vadd.f32 %v948, %v1151
        %v1153 = vpop.f32.mrb[0].mxu0
        %v1154 = vadd.f32 %v948, %v1153
        %1155 = vmatprep.mubr.f32.mxu0 0.0
        %1156 = vmatmul.mubr.f32.gmra.mrb[0].mxu0 %v1005
        %v1157 = vpop.f32.mrb[0].mxu0
        %v1158 = vadd.f32 %v953, %v1157
        %v1159 = vpop.f32.mrb[0].mxu0
        %v1160 = vadd.f32 %v953, %v1159
        %1161 = vmatprep.mubr.f32.mxu0 0.0
        %1162 = vmatmul.mubr.f32.gmra.mrb[0].mxu0 %v1008
        %v1163 = vpop.f32.mrb[0].mxu0
        %v1164 = vadd.f32 %v958, %v1163
        %v1165 = vpop.f32.mrb[0].mxu0
        %v1166 = vadd.f32 %v958, %v1165
        %1167 = vmatprep.mubr.f32.mxu0 0.0
        %1168 = vmatmul.mubr.f32.gmra.mrb[0].mxu0 %v1011
        %v1169 = vpop.f32.mrb[0].mxu0
        %v1170 = vadd.f32 %v963, %v1169
        %v1171 = vpop.f32.mrb[0].mxu0
        %v1172 = vadd.f32 %v963, %v1171
        %1173 = vdwg.mxu0
        %v1174 = vpack.c.bf16 %v1086, %v1080
        %v1175 = vpack.c.bf16 %v1088, %v1082
        %v1176 = vpack.c.bf16 %v1098, %v1092
        %v1177 = vpack.c.bf16 %v1100, %v1094
        %v1178 = vpack.c.bf16 %v1110, %v1104
        %v1179 = vpack.c.bf16 %v1112, %v1106
        %v1180 = vpack.c.bf16 %v1122, %v1116
        %v1181 = vpack.c.bf16 %v1124, %v1118
        %v1182 = vpack.c.bf16 %v1134, %v1128
        %v1183 = vpack.c.bf16 %v1136, %v1130
        %v1184 = vpack.c.bf16 %v1146, %v1140
        %v1185 = vpack.c.bf16 %v1148, %v1142
        %v1186 = vpack.c.bf16 %v1158, %v1152
        %v1187 = vpack.c.bf16 %v1160, %v1154
        %v1188 = vpack.c.bf16 %v1170, %v1164
        %v1189 = vpack.c.bf16 %v1172, %v1166
        %1190 = vmatprep.subr.bf16.mxu0 %v1175
        %1191 = vmatpush1.bf16.msra.mxu0 %v1174
        %1192 = vmatprep.subr.bf16.mxu0 %v1177
        %1193 = vmatpush1.bf16.msra.mxu0 %v1176
        %1194 = vmatprep.subr.bf16.mxu0 %v1179
        %1195 = vmatpush1.bf16.msra.mxu0 %v1178
        %1196 = vmatprep.subr.bf16.mxu0 %v1181
        %1197 = vmatpush1.bf16.msra.mxu0 %v1180
        %1198 = vmatprep.subr.bf16.mxu0 %v1183
        %1199 = vmatpush1.bf16.msra.mxu0 %v1182
        %1200 = vmatprep.subr.bf16.mxu0 %v1185
        %1201 = vmatpush1.bf16.msra.mxu0 %v1184
        %1202 = vmatprep.subr.bf16.mxu0 %v1187
        %1203 = vmatpush1.bf16.msra.mxu0 %v1186
        %1204 = vmatprep.subr.bf16.mxu0 %v1189
        %1205 = vmatpush1.bf16.msra.mxu0 %v1188
        %1206 = vmatprep.subr.bf16.mxu0 0
        %1207 = vmatpush1.bf16.msra.mxu0 0
        %1208 = vmatprep.subr.bf16.mxu0 0
        %1209 = vmatpush1.bf16.msra.mxu0 0
        %1210 = vmatprep.subr.bf16.mxu0 0
        %1211 = vmatpush1.bf16.msra.mxu0 0
        %1212 = vmatprep.subr.bf16.mxu0 0
        %1213 = vmatpush1.bf16.msra.mxu0 0
        %1214 = vmatprep.subr.bf16.mxu0 0
        %1215 = vmatpush1.bf16.msra.mxu0 0
        %1216 = vmatprep.subr.bf16.mxu0 0
        %1217 = vmatpush1.bf16.msra.mxu0 0
        %1218 = vmatprep.subr.bf16.mxu0 0
        %1219 = vmatpush1.bf16.msra.mxu0 0
        %1220 = vmatprep.subr.bf16.mxu0 0
        %1221 = vmatpush1.bf16.msra.mxu0 0
        %1222 = vmatprep.mubr.bf16.mxu0 0
        %1223 = vmatmul.mubr.bf16.gmra.mrb[0].mxu0 %v837
        %v1224 = vpop.f32.mrb[0].mxu0
        %v1225 = vadd.f32 0.0, %v1224
        %v1226 = vpop.f32.mrb[0].mxu0
        %v1227 = vadd.f32 0.0, %v1226
        %v1228 = vpop.f32.mrb[0].mxu0
        %v1229 = vadd.f32 0.0, %v1228
        %v1230 = vpop.f32.mrb[0].mxu0
        %v1231 = vadd.f32 0.0, %v1230
        %1232 = vmatprep.mubr.bf16.mxu0 0
        %1233 = vmatmul.mubr.bf16.gmra.mrb[0].mxu0 %v838
        %v1234 = vpop.f32.mrb[0].mxu0
        %v1235 = vadd.f32 0.0, %v1234
        %v1236 = vpop.f32.mrb[0].mxu0
        %v1237 = vadd.f32 0.0, %v1236
        %v1238 = vpop.f32.mrb[0].mxu0
        %v1239 = vadd.f32 0.0, %v1238
        %v1240 = vpop.f32.mrb[0].mxu0
        %v1241 = vadd.f32 0.0, %v1240
        %1242 = vmatprep.mubr.bf16.mxu0 0
        %1243 = vmatmul.mubr.bf16.gmra.mrb[0].mxu0 %v839
        %v1244 = vpop.f32.mrb[0].mxu0
        %v1245 = vadd.f32 0.0, %v1244
        %v1246 = vpop.f32.mrb[0].mxu0
        %v1247 = vadd.f32 0.0, %v1246
        %v1248 = vpop.f32.mrb[0].mxu0
        %v1249 = vadd.f32 0.0, %v1248
        %v1250 = vpop.f32.mrb[0].mxu0
        %v1251 = vadd.f32 0.0, %v1250
        %1252 = vmatprep.mubr.bf16.mxu0 0
        %1253 = vmatmul.mubr.bf16.gmra.mrb[0].mxu0 %v840
        %v1254 = vpop.f32.mrb[0].mxu0
        %v1255 = vadd.f32 0.0, %v1254
        %v1256 = vpop.f32.mrb[0].mxu0
        %v1257 = vadd.f32 0.0, %v1256
        %v1258 = vpop.f32.mrb[0].mxu0
        %v1259 = vadd.f32 0.0, %v1258
        %v1260 = vpop.f32.mrb[0].mxu0
        %v1261 = vadd.f32 0.0, %v1260
        %1262 = vmatprep.mubr.bf16.mxu0 0
        %1263 = vmatmul.mubr.bf16.gmra.mrb[0].mxu0 %v841
        %v1264 = vpop.f32.mrb[0].mxu0
        %v1265 = vadd.f32 0.0, %v1264
        %v1266 = vpop.f32.mrb[0].mxu0
        %v1267 = vadd.f32 0.0, %v1266
        %v1268 = vpop.f32.mrb[0].mxu0
        %v1269 = vadd.f32 0.0, %v1268
        %v1270 = vpop.f32.mrb[0].mxu0
        %v1271 = vadd.f32 0.0, %v1270
        %1272 = vmatprep.mubr.bf16.mxu0 0
        %1273 = vmatmul.mubr.bf16.gmra.mrb[0].mxu0 %v842
        %v1274 = vpop.f32.mrb[0].mxu0
        %v1275 = vadd.f32 0.0, %v1274
        %v1276 = vpop.f32.mrb[0].mxu0
        %v1277 = vadd.f32 0.0, %v1276
        %v1278 = vpop.f32.mrb[0].mxu0
        %v1279 = vadd.f32 0.0, %v1278
        %v1280 = vpop.f32.mrb[0].mxu0
        %v1281 = vadd.f32 0.0, %v1280
        %1282 = vmatprep.mubr.bf16.mxu0 0
        %1283 = vmatmul.mubr.bf16.gmra.mrb[0].mxu0 %v843
        %v1284 = vpop.f32.mrb[0].mxu0
        %v1285 = vadd.f32 0.0, %v1284
        %v1286 = vpop.f32.mrb[0].mxu0
        %v1287 = vadd.f32 0.0, %v1286
        %v1288 = vpop.f32.mrb[0].mxu0
        %v1289 = vadd.f32 0.0, %v1288
        %v1290 = vpop.f32.mrb[0].mxu0
        %v1291 = vadd.f32 0.0, %v1290
        %1292 = vmatprep.mubr.bf16.mxu0 0
        %1293 = vmatmul.mubr.bf16.gmra.mrb[0].mxu0 %v844
        %v1294 = vpop.f32.mrb[0].mxu0
        %v1295 = vadd.f32 0.0, %v1294
        %v1296 = vpop.f32.mrb[0].mxu0
        %v1297 = vadd.f32 0.0, %v1296
        %v1298 = vpop.f32.mrb[0].mxu0
        %v1299 = vadd.f32 0.0, %v1298
        %v1300 = vpop.f32.mrb[0].mxu0
        %v1301 = vadd.f32 0.0, %v1300
        %1302 = vmatprep.mubr.bf16.mxu0 0
        %1303 = vmatmul.mubr.bf16.gmra.mrb[0].mxu0 %v845
        %v1304 = vpop.f32.mrb[0].mxu0
        %v1305 = vadd.f32 0.0, %v1304
        %v1306 = vpop.f32.mrb[0].mxu0
        %v1307 = vadd.f32 0.0, %v1306
        %v1308 = vpop.f32.mrb[0].mxu0
        %v1309 = vadd.f32 0.0, %v1308
        %v1310 = vpop.f32.mrb[0].mxu0
        %v1311 = vadd.f32 0.0, %v1310
        %1312 = vmatprep.mubr.bf16.mxu0 0
        %1313 = vmatmul.mubr.bf16.gmra.mrb[0].mxu0 %v846
        %v1314 = vpop.f32.mrb[0].mxu0
        %v1315 = vadd.f32 0.0, %v1314
        %v1316 = vpop.f32.mrb[0].mxu0
        %v1317 = vadd.f32 0.0, %v1316
        %v1318 = vpop.f32.mrb[0].mxu0
        %v1319 = vadd.f32 0.0, %v1318
        %v1320 = vpop.f32.mrb[0].mxu0
        %v1321 = vadd.f32 0.0, %v1320
        %1322 = vmatprep.mubr.bf16.mxu0 0
        %1323 = vmatmul.mubr.bf16.gmra.mrb[0].mxu0 %v847
        %v1324 = vpop.f32.mrb[0].mxu0
        %v1325 = vadd.f32 0.0, %v1324
        %v1326 = vpop.f32.mrb[0].mxu0
        %v1327 = vadd.f32 0.0, %v1326
        %v1328 = vpop.f32.mrb[0].mxu0
        %v1329 = vadd.f32 0.0, %v1328
        %v1330 = vpop.f32.mrb[0].mxu0
        %v1331 = vadd.f32 0.0, %v1330
        %1332 = vmatprep.mubr.bf16.mxu0 0
        %1333 = vmatmul.mubr.bf16.gmra.mrb[0].mxu0 %v848
        %v1334 = vpop.f32.mrb[0].mxu0
        %v1335 = vadd.f32 0.0, %v1334
        %v1336 = vpop.f32.mrb[0].mxu0
        %v1337 = vadd.f32 0.0, %v1336
        %v1338 = vpop.f32.mrb[0].mxu0
        %v1339 = vadd.f32 0.0, %v1338
        %v1340 = vpop.f32.mrb[0].mxu0
        %v1341 = vadd.f32 0.0, %v1340
        %1342 = vmatprep.mubr.bf16.mxu0 0
        %1343 = vmatmul.mubr.bf16.gmra.mrb[0].mxu0 %v849
        %v1344 = vpop.f32.mrb[0].mxu0
        %v1345 = vadd.f32 0.0, %v1344
        %v1346 = vpop.f32.mrb[0].mxu0
        %v1347 = vadd.f32 0.0, %v1346
        %v1348 = vpop.f32.mrb[0].mxu0
        %v1349 = vadd.f32 0.0, %v1348
        %v1350 = vpop.f32.mrb[0].mxu0
        %v1351 = vadd.f32 0.0, %v1350
        %1352 = vmatprep.mubr.bf16.mxu0 0
        %1353 = vmatmul.mubr.bf16.gmra.mrb[0].mxu0 %v850
        %v1354 = vpop.f32.mrb[0].mxu0
        %v1355 = vadd.f32 0.0, %v1354
        %v1356 = vpop.f32.mrb[0].mxu0
        %v1357 = vadd.f32 0.0, %v1356
        %v1358 = vpop.f32.mrb[0].mxu0
        %v1359 = vadd.f32 0.0, %v1358
        %v1360 = vpop.f32.mrb[0].mxu0
        %v1361 = vadd.f32 0.0, %v1360
        %1362 = vmatprep.mubr.bf16.mxu0 0
        %1363 = vmatmul.mubr.bf16.gmra.mrb[0].mxu0 %v851
        %v1364 = vpop.f32.mrb[0].mxu0
        %v1365 = vadd.f32 0.0, %v1364
        %v1366 = vpop.f32.mrb[0].mxu0
        %v1367 = vadd.f32 0.0, %v1366
        %v1368 = vpop.f32.mrb[0].mxu0
        %v1369 = vadd.f32 0.0, %v1368
        %v1370 = vpop.f32.mrb[0].mxu0
        %v1371 = vadd.f32 0.0, %v1370
        %1372 = vmatprep.mubr.bf16.mxu0 0
        %1373 = vmatmul.mubr.bf16.gmra.mrb[0].mxu0 %v852
        %v1374 = vpop.f32.mrb[0].mxu0
        %v1375 = vadd.f32 0.0, %v1374
        %v1376 = vpop.f32.mrb[0].mxu0
        %v1377 = vadd.f32 0.0, %v1376
        %v1378 = vpop.f32.mrb[0].mxu0
        %v1379 = vadd.f32 0.0, %v1378
        %v1380 = vpop.f32.mrb[0].mxu0
        %v1381 = vadd.f32 0.0, %v1380
        %1382 = vdwg.mxu0
        %v1383 = vld [vmem:[#allocation2] sm:$0xff]
        %v1384 = vld [vmem:[#allocation2 + $0x8] sm:$0xff]
        %v1385 = vld [vmem:[#allocation2 + $0x10] sm:$0xff]
        %v1386 = vld [vmem:[#allocation2 + $0x18] sm:$0xff]
        %v1387 = vld [vmem:[#allocation2 + $0x20] sm:$0xff]
        %v1388 = vld [vmem:[#allocation2 + $0x28] sm:$0xff]
        %v1389 = vld [vmem:[#allocation2 + $0x30] sm:$0xff]
        %v1390 = vld [vmem:[#allocation2 + $0x38] sm:$0xff]
        %v1391 = vld [vmem:[#allocation2 + $0x40] sm:$0xff]
        %v1392 = vld [vmem:[#allocation2 + $0x48] sm:$0xff]
        %v1393 = vld [vmem:[#allocation2 + $0x50] sm:$0xff]
        %v1394 = vld [vmem:[#allocation2 + $0x58] sm:$0xff]
        %v1395 = vld [vmem:[#allocation2 + $0x60] sm:$0xff]
        %v1396 = vld [vmem:[#allocation2 + $0x68] sm:$0xff]
        %v1397 = vld [vmem:[#allocation2 + $0x70] sm:$0xff]
        %v1398 = vld [vmem:[#allocation2 + $0x78] sm:$0xff]
        %v1399 = vld [vmem:[#allocation2 + $0x80] sm:$0xff]
        %v1400 = vld [vmem:[#allocation2 + $0x88] sm:$0xff]
        %v1401 = vld [vmem:[#allocation2 + $0x90] sm:$0xff]
        %v1402 = vld [vmem:[#allocation2 + $0x98] sm:$0xff]
        %v1403 = vld [vmem:[#allocation2 + $0xa0] sm:$0xff]
        %v1404 = vld [vmem:[#allocation2 + $0xa8] sm:$0xff]
        %v1405 = vld [vmem:[#allocation2 + $0xb0] sm:$0xff]
        %v1406 = vld [vmem:[#allocation2 + $0xb8] sm:$0xff]
        %v1407 = vld [vmem:[#allocation2 + $0xc0] sm:$0xff]
        %v1408 = vld [vmem:[#allocation2 + $0xc8] sm:$0xff]
        %v1409 = vld [vmem:[#allocation2 + $0xd0] sm:$0xff]
        %v1410 = vld [vmem:[#allocation2 + $0xd8] sm:$0xff]
        %v1411 = vld [vmem:[#allocation2 + $0xe0] sm:$0xff]
        %v1412 = vld [vmem:[#allocation2 + $0xe8] sm:$0xff]
        %v1413 = vld [vmem:[#allocation2 + $0xf0] sm:$0xff]
        %v1414 = vld [vmem:[#allocation2 + $0xf8] sm:$0xff]
        %v1415 = vmax.f32 %v1225, %v1227
        %1416 = vmax.xlane.f32.xlu0 %v1415
        %v1417 = vpop.xlane.xlu0 %1416
        %v1418 = vmax.f32 %v1229, %v1231
        %1419 = vmax.xlane.f32.xlu0 %v1418
        %v1420 = vpop.xlane.xlu0 %1419
        %v1421 = vmax.f32 %v1235, %v1237
        %1422 = vmax.xlane.f32.xlu0 %v1421
        %v1423 = vpop.xlane.xlu0 %1422
        %v1424 = vmax.f32 %v1239, %v1241
        %1425 = vmax.xlane.f32.xlu0 %v1424
        %v1426 = vpop.xlane.xlu0 %1425
        %v1427 = vmax.f32 %v1245, %v1247
        %1428 = vmax.xlane.f32.xlu0 %v1427
        %v1429 = vpop.xlane.xlu0 %1428
        %v1430 = vmax.f32 %v1249, %v1251
        %1431 = vmax.xlane.f32.xlu0 %v1430
        %v1432 = vpop.xlane.xlu0 %1431
        %v1433 = vmax.f32 %v1255, %v1257
        %1434 = vmax.xlane.f32.xlu0 %v1433
        %v1435 = vpop.xlane.xlu0 %1434
        %v1436 = vmax.f32 %v1259, %v1261
        %1437 = vmax.xlane.f32.xlu0 %v1436
        %v1438 = vpop.xlane.xlu0 %1437
        %v1439 = vmax.f32 %v1265, %v1267
        %1440 = vmax.xlane.f32.xlu0 %v1439
        %v1441 = vpop.xlane.xlu0 %1440
        %v1442 = vmax.f32 %v1269, %v1271
        %1443 = vmax.xlane.f32.xlu0 %v1442
        %v1444 = vpop.xlane.xlu0 %1443
        %v1445 = vmax.f32 %v1275, %v1277
        %1446 = vmax.xlane.f32.xlu0 %v1445
        %v1447 = vpop.xlane.xlu0 %1446
        %v1448 = vmax.f32 %v1279, %v1281
        %1449 = vmax.xlane.f32.xlu0 %v1448
        %v1450 = vpop.xlane.xlu0 %1449
        %v1451 = vmax.f32 %v1285, %v1287
        %1452 = vmax.xlane.f32.xlu0 %v1451
        %v1453 = vpop.xlane.xlu0 %1452
        %v1454 = vmax.f32 %v1289, %v1291
        %1455 = vmax.xlane.f32.xlu0 %v1454
        %v1456 = vpop.xlane.xlu0 %1455
        %v1457 = vmax.f32 %v1295, %v1297
        %1458 = vmax.xlane.f32.xlu0 %v1457
        %v1459 = vpop.xlane.xlu0 %1458
        %v1460 = vmax.f32 %v1299, %v1301
        %1461 = vmax.xlane.f32.xlu0 %v1460
        %v1462 = vpop.xlane.xlu0 %1461
        %v1463 = vmax.f32 %v1305, %v1307
        %1464 = vmax.xlane.f32.xlu0 %v1463
        %v1465 = vpop.xlane.xlu0 %1464
        %v1466 = vmax.f32 %v1309, %v1311
        %1467 = vmax.xlane.f32.xlu0 %v1466
        %v1468 = vpop.xlane.xlu0 %1467
        %v1469 = vmax.f32 %v1315, %v1317
        %1470 = vmax.xlane.f32.xlu0 %v1469
        %v1471 = vpop.xlane.xlu0 %1470
        %v1472 = vmax.f32 %v1319, %v1321
        %1473 = vmax.xlane.f32.xlu0 %v1472
        %v1474 = vpop.xlane.xlu0 %1473
        %v1475 = vmax.f32 %v1325, %v1327
        %1476 = vmax.xlane.f32.xlu0 %v1475
        %v1477 = vpop.xlane.xlu0 %1476
        %v1478 = vmax.f32 %v1329, %v1331
        %1479 = vmax.xlane.f32.xlu0 %v1478
        %v1480 = vpop.xlane.xlu0 %1479
        %v1481 = vmax.f32 %v1335, %v1337
        %1482 = vmax.xlane.f32.xlu0 %v1481
        %v1483 = vpop.xlane.xlu0 %1482
        %v1484 = vmax.f32 %v1339, %v1341
        %1485 = vmax.xlane.f32.xlu0 %v1484
        %v1486 = vpop.xlane.xlu0 %1485
        %v1487 = vmax.f32 %v1345, %v1347
        %1488 = vmax.xlane.f32.xlu0 %v1487
        %v1489 = vpop.xlane.xlu0 %1488
        %v1490 = vmax.f32 %v1349, %v1351
        %1491 = vmax.xlane.f32.xlu0 %v1490
        %v1492 = vpop.xlane.xlu0 %1491
        %v1493 = vmax.f32 %v1355, %v1357
        %1494 = vmax.xlane.f32.xlu0 %v1493
        %v1495 = vpop.xlane.xlu0 %1494
        %v1496 = vmax.f32 %v1359, %v1361
        %1497 = vmax.xlane.f32.xlu0 %v1496
        %v1498 = vpop.xlane.xlu0 %1497
        %v1499 = vmax.f32 %v1365, %v1367
        %1500 = vmax.xlane.f32.xlu0 %v1499
        %v1501 = vpop.xlane.xlu0 %1500
        %v1502 = vmax.f32 %v1369, %v1371
        %1503 = vmax.xlane.f32.xlu0 %v1502
        %v1504 = vpop.xlane.xlu0 %1503
        %v1505 = vmax.f32 %v1375, %v1377
        %1506 = vmax.xlane.f32.xlu0 %v1505
        %v1507 = vpop.xlane.xlu0 %1506
        %v1508 = vmax.f32 %v1379, %v1381
        %1509 = vmax.xlane.f32.xlu0 %v1508
        %v1510 = vpop.xlane.xlu0 %1509
        %v1511 = vmax.f32 %v1383, %v1417
        %v1512 = vmax.f32 %v1384, %v1420
        %v1513 = vmax.f32 %v1385, %v1423
        %v1514 = vmax.f32 %v1386, %v1426
        %v1515 = vmax.f32 %v1387, %v1429
        %v1516 = vmax.f32 %v1388, %v1432
        %v1517 = vmax.f32 %v1389, %v1435
        %v1518 = vmax.f32 %v1390, %v1438
        %v1519 = vmax.f32 %v1391, %v1441
        %v1520 = vmax.f32 %v1392, %v1444
        %v1521 = vmax.f32 %v1393, %v1447
        %v1522 = vmax.f32 %v1394, %v1450
        %v1523 = vmax.f32 %v1395, %v1453
        %v1524 = vmax.f32 %v1396, %v1456
        %v1525 = vmax.f32 %v1397, %v1459
        %v1526 = vmax.f32 %v1398, %v1462
        %v1527 = vmax.f32 %v1399, %v1465
        %v1528 = vmax.f32 %v1400, %v1468
        %v1529 = vmax.f32 %v1401, %v1471
        %v1530 = vmax.f32 %v1402, %v1474
        %v1531 = vmax.f32 %v1403, %v1477
        %v1532 = vmax.f32 %v1404, %v1480
        %v1533 = vmax.f32 %v1405, %v1483
        %v1534 = vmax.f32 %v1406, %v1486
        %v1535 = vmax.f32 %v1407, %v1489
        %v1536 = vmax.f32 %v1408, %v1492
        %v1537 = vmax.f32 %v1409, %v1495
        %v1538 = vmax.f32 %v1410, %v1498
        %v1539 = vmax.f32 %v1411, %v1501
        %v1540 = vmax.f32 %v1412, %v1504
        %v1541 = vmax.f32 %v1413, %v1507
        %v1542 = vmax.f32 %v1414, %v1510
        %v1543 = vld [vmem:[#allocation3] sm:$0xff]
        %v1544 = vld [vmem:[#allocation3 + $0x8] sm:$0xff]
        %v1545 = vld [vmem:[#allocation3 + $0x10] sm:$0xff]
        %v1546 = vld [vmem:[#allocation3 + $0x18] sm:$0xff]
        %v1547 = vld [vmem:[#allocation3 + $0x20] sm:$0xff]
        %v1548 = vld [vmem:[#allocation3 + $0x28] sm:$0xff]
        %v1549 = vld [vmem:[#allocation3 + $0x30] sm:$0xff]
        %v1550 = vld [vmem:[#allocation3 + $0x38] sm:$0xff]
        %v1551 = vld [vmem:[#allocation3 + $0x40] sm:$0xff]
        %v1552 = vld [vmem:[#allocation3 + $0x48] sm:$0xff]
        %v1553 = vld [vmem:[#allocation3 + $0x50] sm:$0xff]
        %v1554 = vld [vmem:[#allocation3 + $0x58] sm:$0xff]
        %v1555 = vld [vmem:[#allocation3 + $0x60] sm:$0xff]
        %v1556 = vld [vmem:[#allocation3 + $0x68] sm:$0xff]
        %v1557 = vld [vmem:[#allocation3 + $0x70] sm:$0xff]
        %v1558 = vld [vmem:[#allocation3 + $0x78] sm:$0xff]
        %v1559 = vld [vmem:[#allocation3 + $0x80] sm:$0xff]
        %v1560 = vld [vmem:[#allocation3 + $0x88] sm:$0xff]
        %v1561 = vld [vmem:[#allocation3 + $0x90] sm:$0xff]
        %v1562 = vld [vmem:[#allocation3 + $0x98] sm:$0xff]
        %v1563 = vld [vmem:[#allocation3 + $0xa0] sm:$0xff]
        %v1564 = vld [vmem:[#allocation3 + $0xa8] sm:$0xff]
        %v1565 = vld [vmem:[#allocation3 + $0xb0] sm:$0xff]
        %v1566 = vld [vmem:[#allocation3 + $0xb8] sm:$0xff]
        %v1567 = vld [vmem:[#allocation3 + $0xc0] sm:$0xff]
        %v1568 = vld [vmem:[#allocation3 + $0xc8] sm:$0xff]
        %v1569 = vld [vmem:[#allocation3 + $0xd0] sm:$0xff]
        %v1570 = vld [vmem:[#allocation3 + $0xd8] sm:$0xff]
        %v1571 = vld [vmem:[#allocation3 + $0xe0] sm:$0xff]
        %v1572 = vld [vmem:[#allocation3 + $0xe8] sm:$0xff]
        %v1573 = vld [vmem:[#allocation3 + $0xf0] sm:$0xff]
        %v1574 = vld [vmem:[#allocation3 + $0xf8] sm:$0xff]
        %v1575 = vsub.f32 %v1383, %v1511
        %v1576 = vsub.f32 %v1384, %v1512
        %v1577 = vsub.f32 %v1385, %v1513
        %v1578 = vsub.f32 %v1386, %v1514
        %v1579 = vsub.f32 %v1387, %v1515
        %v1580 = vsub.f32 %v1388, %v1516
        %v1581 = vsub.f32 %v1389, %v1517
        %v1582 = vsub.f32 %v1390, %v1518
        %v1583 = vsub.f32 %v1391, %v1519
        %v1584 = vsub.f32 %v1392, %v1520
        %v1585 = vsub.f32 %v1393, %v1521
        %v1586 = vsub.f32 %v1394, %v1522
        %v1587 = vsub.f32 %v1395, %v1523
        %v1588 = vsub.f32 %v1396, %v1524
        %v1589 = vsub.f32 %v1397, %v1525
        %v1590 = vsub.f32 %v1398, %v1526
        %v1591 = vsub.f32 %v1399, %v1527
        %v1592 = vsub.f32 %v1400, %v1528
        %v1593 = vsub.f32 %v1401, %v1529
        %v1594 = vsub.f32 %v1402, %v1530
        %v1595 = vsub.f32 %v1403, %v1531
        %v1596 = vsub.f32 %v1404, %v1532
        %v1597 = vsub.f32 %v1405, %v1533
        %v1598 = vsub.f32 %v1406, %v1534
        %v1599 = vsub.f32 %v1407, %v1535
        %v1600 = vsub.f32 %v1408, %v1536
        %v1601 = vsub.f32 %v1409, %v1537
        %v1602 = vsub.f32 %v1410, %v1538
        %v1603 = vsub.f32 %v1411, %v1539
        %v1604 = vsub.f32 %v1412, %v1540
        %v1605 = vsub.f32 %v1413, %v1541
        %v1606 = vsub.f32 %v1414, %v1542
        %v1607 = vmul.f32 %v1575, 1.442695
        %v1608 = vpow.pop %v1607
        %v1609 = vmul.f32 %v1576, 1.442695
        %v1610 = vpow.pop %v1609
        %v1611 = vmul.f32 %v1577, 1.442695
        %v1612 = vpow.pop %v1611
        %v1613 = vmul.f32 %v1578, 1.442695
        %v1614 = vpow.pop %v1613
        %v1615 = vmul.f32 %v1579, 1.442695
        %v1616 = vpow.pop %v1615
        %v1617 = vmul.f32 %v1580, 1.442695
        %v1618 = vpow.pop %v1617
        %v1619 = vmul.f32 %v1581, 1.442695
        %v1620 = vpow.pop %v1619
        %v1621 = vmul.f32 %v1582, 1.442695
        %v1622 = vpow.pop %v1621
        %v1623 = vmul.f32 %v1583, 1.442695
        %v1624 = vpow.pop %v1623
        %v1625 = vmul.f32 %v1584, 1.442695
        %v1626 = vpow.pop %v1625
        %v1627 = vmul.f32 %v1585, 1.442695
        %v1628 = vpow.pop %v1627
        %v1629 = vmul.f32 %v1586, 1.442695
        %v1630 = vpow.pop %v1629
        %v1631 = vmul.f32 %v1587, 1.442695
        %v1632 = vpow.pop %v1631
        %v1633 = vmul.f32 %v1588, 1.442695
        %v1634 = vpow.pop %v1633
        %v1635 = vmul.f32 %v1589, 1.442695
        %v1636 = vpow.pop %v1635
        %v1637 = vmul.f32 %v1590, 1.442695
        %v1638 = vpow.pop %v1637
        %v1639 = vmul.f32 %v1591, 1.442695
        %v1640 = vpow.pop %v1639
        %v1641 = vmul.f32 %v1592, 1.442695
        %v1642 = vpow.pop %v1641
        %v1643 = vmul.f32 %v1593, 1.442695
        %v1644 = vpow.pop %v1643
        %v1645 = vmul.f32 %v1594, 1.442695
        %v1646 = vpow.pop %v1645
        %v1647 = vmul.f32 %v1595, 1.442695
        %v1648 = vpow.pop %v1647
        %v1649 = vmul.f32 %v1596, 1.442695
        %v1650 = vpow.pop %v1649
        %v1651 = vmul.f32 %v1597, 1.442695
        %v1652 = vpow.pop %v1651
        %v1653 = vmul.f32 %v1598, 1.442695
        %v1654 = vpow.pop %v1653
        %v1655 = vmul.f32 %v1599, 1.442695
        %v1656 = vpow.pop %v1655
        %v1657 = vmul.f32 %v1600, 1.442695
        %v1658 = vpow.pop %v1657
        %v1659 = vmul.f32 %v1601, 1.442695
        %v1660 = vpow.pop %v1659
        %v1661 = vmul.f32 %v1602, 1.442695
        %v1662 = vpow.pop %v1661
        %v1663 = vmul.f32 %v1603, 1.442695
        %v1664 = vpow.pop %v1663
        %v1665 = vmul.f32 %v1604, 1.442695
        %v1666 = vpow.pop %v1665
        %v1667 = vmul.f32 %v1605, 1.442695
        %v1668 = vpow.pop %v1667
        %v1669 = vmul.f32 %v1606, 1.442695
        %v1670 = vpow.pop %v1669
        %v1671 = vmul.f32 %v1543, %v1608
        %v1672 = vmul.f32 %v1544, %v1610
        %v1673 = vmul.f32 %v1545, %v1612
        %v1674 = vmul.f32 %v1546, %v1614
        %v1675 = vmul.f32 %v1547, %v1616
        %v1676 = vmul.f32 %v1548, %v1618
        %v1677 = vmul.f32 %v1549, %v1620
        %v1678 = vmul.f32 %v1550, %v1622
        %v1679 = vmul.f32 %v1551, %v1624
        %v1680 = vmul.f32 %v1552, %v1626
        %v1681 = vmul.f32 %v1553, %v1628
        %v1682 = vmul.f32 %v1554, %v1630
        %v1683 = vmul.f32 %v1555, %v1632
        %v1684 = vmul.f32 %v1556, %v1634
        %v1685 = vmul.f32 %v1557, %v1636
        %v1686 = vmul.f32 %v1558, %v1638
        %v1687 = vmul.f32 %v1559, %v1640
        %v1688 = vmul.f32 %v1560, %v1642
        %v1689 = vmul.f32 %v1561, %v1644
        %v1690 = vmul.f32 %v1562, %v1646
        %v1691 = vmul.f32 %v1563, %v1648
        %v1692 = vmul.f32 %v1564, %v1650
        %v1693 = vmul.f32 %v1565, %v1652
        %v1694 = vmul.f32 %v1566, %v1654
        %v1695 = vmul.f32 %v1567, %v1656
        %v1696 = vmul.f32 %v1568, %v1658
        %v1697 = vmul.f32 %v1569, %v1660
        %v1698 = vmul.f32 %v1570, %v1662
        %v1699 = vmul.f32 %v1571, %v1664
        %v1700 = vmul.f32 %v1572, %v1666
        %v1701 = vmul.f32 %v1573, %v1668
        %v1702 = vmul.f32 %v1574, %v1670
        %1704 = vset.pattern.permute.xlu0 0
        %1705 = vperm.xlu0 %1704, %v1511
        %v1706 = vpop.permute.xlu0 %1705
        %1709 = vset.pattern.permute.xlu0 0
        %1710 = vperm.xlu0 %1709, %v1512
        %v1711 = vpop.permute.xlu0 %1710
        %1714 = vset.pattern.permute.xlu0 0
        %1715 = vperm.xlu0 %1714, %v1513
        %v1716 = vpop.permute.xlu0 %1715
        %1719 = vset.pattern.permute.xlu0 0
        %1720 = vperm.xlu0 %1719, %v1514
        %v1721 = vpop.permute.xlu0 %1720
        %1724 = vset.pattern.permute.xlu0 0
        %1725 = vperm.xlu0 %1724, %v1515
        %v1726 = vpop.permute.xlu0 %1725
        %1729 = vset.pattern.permute.xlu0 0
        %1730 = vperm.xlu0 %1729, %v1516
        %v1731 = vpop.permute.xlu0 %1730
        %1734 = vset.pattern.permute.xlu0 0
        %1735 = vperm.xlu0 %1734, %v1517
        %v1736 = vpop.permute.xlu0 %1735
        %1739 = vset.pattern.permute.xlu0 0
        %1740 = vperm.xlu0 %1739, %v1518
        %v1741 = vpop.permute.xlu0 %1740
        %1744 = vset.pattern.permute.xlu0 0
        %1745 = vperm.xlu0 %1744, %v1519
        %v1746 = vpop.permute.xlu0 %1745
        %1749 = vset.pattern.permute.xlu0 0
        %1750 = vperm.xlu0 %1749, %v1520
        %v1751 = vpop.permute.xlu0 %1750
        %1754 = vset.pattern.permute.xlu0 0
        %1755 = vperm.xlu0 %1754, %v1521
        %v1756 = vpop.permute.xlu0 %1755
        %1759 = vset.pattern.permute.xlu0 0
        %1760 = vperm.xlu0 %1759, %v1522
        %v1761 = vpop.permute.xlu0 %1760
        %1764 = vset.pattern.permute.xlu0 0
        %1765 = vperm.xlu0 %1764, %v1523
        %v1766 = vpop.permute.xlu0 %1765
        %1769 = vset.pattern.permute.xlu0 0
        %1770 = vperm.xlu0 %1769, %v1524
        %v1771 = vpop.permute.xlu0 %1770
        %1774 = vset.pattern.permute.xlu0 0
        %1775 = vperm.xlu0 %1774, %v1525
        %v1776 = vpop.permute.xlu0 %1775
        %1779 = vset.pattern.permute.xlu0 0
        %1780 = vperm.xlu0 %1779, %v1526
        %v1781 = vpop.permute.xlu0 %1780
        %1784 = vset.pattern.permute.xlu0 0
        %1785 = vperm.xlu0 %1784, %v1527
        %v1786 = vpop.permute.xlu0 %1785
        %1789 = vset.pattern.permute.xlu0 0
        %1790 = vperm.xlu0 %1789, %v1528
        %v1791 = vpop.permute.xlu0 %1790
        %1794 = vset.pattern.permute.xlu0 0
        %1795 = vperm.xlu0 %1794, %v1529
        %v1796 = vpop.permute.xlu0 %1795
        %1799 = vset.pattern.permute.xlu0 0
        %1800 = vperm.xlu0 %1799, %v1530
        %v1801 = vpop.permute.xlu0 %1800
        %1804 = vset.pattern.permute.xlu0 0
        %1805 = vperm.xlu0 %1804, %v1531
        %v1806 = vpop.permute.xlu0 %1805
        %1809 = vset.pattern.permute.xlu0 0
        %1810 = vperm.xlu0 %1809, %v1532
        %v1811 = vpop.permute.xlu0 %1810
        %1814 = vset.pattern.permute.xlu0 0
        %1815 = vperm.xlu0 %1814, %v1533
        %v1816 = vpop.permute.xlu0 %1815
        %1819 = vset.pattern.permute.xlu0 0
        %1820 = vperm.xlu0 %1819, %v1534
        %v1821 = vpop.permute.xlu0 %1820
        %1824 = vset.pattern.permute.xlu0 0
        %1825 = vperm.xlu0 %1824, %v1535
        %v1826 = vpop.permute.xlu0 %1825
        %1829 = vset.pattern.permute.xlu0 0
        %1830 = vperm.xlu0 %1829, %v1536
        %v1831 = vpop.permute.xlu0 %1830
        %1834 = vset.pattern.permute.xlu0 0
        %1835 = vperm.xlu0 %1834, %v1537
        %v1836 = vpop.permute.xlu0 %1835
        %1839 = vset.pattern.permute.xlu0 0
        %1840 = vperm.xlu0 %1839, %v1538
        %v1841 = vpop.permute.xlu0 %1840
        %1844 = vset.pattern.permute.xlu0 0
        %1845 = vperm.xlu0 %1844, %v1539
        %v1846 = vpop.permute.xlu0 %1845
        %1849 = vset.pattern.permute.xlu0 0
        %1850 = vperm.xlu0 %1849, %v1540
        %v1851 = vpop.permute.xlu0 %1850
        %1854 = vset.pattern.permute.xlu0 0
        %1855 = vperm.xlu0 %1854, %v1541
        %v1856 = vpop.permute.xlu0 %1855
        %1859 = vset.pattern.permute.xlu0 0
        %1860 = vperm.xlu0 %1859, %v1542
        %v1861 = vpop.permute.xlu0 %1860
        %v1863 = vsub.f32 %v1225, %v1706
        %v1864 = vsub.f32 %v1227, %v1706
        %v1865 = vsub.f32 %v1229, %v1711
        %v1866 = vsub.f32 %v1231, %v1711
        %v1867 = vsub.f32 %v1235, %v1716
        %v1868 = vsub.f32 %v1237, %v1716
        %v1869 = vsub.f32 %v1239, %v1721
        %v1870 = vsub.f32 %v1241, %v1721
        %v1871 = vsub.f32 %v1245, %v1726
        %v1872 = vsub.f32 %v1247, %v1726
        %v1873 = vsub.f32 %v1249, %v1731
        %v1874 = vsub.f32 %v1251, %v1731
        %v1875 = vsub.f32 %v1255, %v1736
        %v1876 = vsub.f32 %v1257, %v1736
        %v1877 = vsub.f32 %v1259, %v1741
        %v1878 = vsub.f32 %v1261, %v1741
        %v1879 = vsub.f32 %v1265, %v1746
        %v1880 = vsub.f32 %v1267, %v1746
        %v1881 = vsub.f32 %v1269, %v1751
        %v1882 = vsub.f32 %v1271, %v1751
        %v1883 = vsub.f32 %v1275, %v1756
        %v1884 = vsub.f32 %v1277, %v1756
        %v1885 = vsub.f32 %v1279, %v1761
        %v1886 = vsub.f32 %v1281, %v1761
        %v1887 = vsub.f32 %v1285, %v1766
        %v1888 = vsub.f32 %v1287, %v1766
        %v1889 = vsub.f32 %v1289, %v1771
        %v1890 = vsub.f32 %v1291, %v1771
        %v1891 = vsub.f32 %v1295, %v1776
        %v1892 = vsub.f32 %v1297, %v1776
        %v1893 = vsub.f32 %v1299, %v1781
        %v1894 = vsub.f32 %v1301, %v1781
        %v1895 = vsub.f32 %v1305, %v1786
        %v1896 = vsub.f32 %v1307, %v1786
        %v1897 = vsub.f32 %v1309, %v1791
        %v1898 = vsub.f32 %v1311, %v1791
        %v1899 = vsub.f32 %v1315, %v1796
        %v1900 = vsub.f32 %v1317, %v1796
        %v1901 = vsub.f32 %v1319, %v1801
        %v1902 = vsub.f32 %v1321, %v1801
        %v1903 = vsub.f32 %v1325, %v1806
        %v1904 = vsub.f32 %v1327, %v1806
        %v1905 = vsub.f32 %v1329, %v1811
        %v1906 = vsub.f32 %v1331, %v1811
        %v1907 = vsub.f32 %v1335, %v1816
        %v1908 = vsub.f32 %v1337, %v1816
        %v1909 = vsub.f32 %v1339, %v1821
        %v1910 = vsub.f32 %v1341, %v1821
        %v1911 = vsub.f32 %v1345, %v1826
        %v1912 = vsub.f32 %v1347, %v1826
        %v1913 = vsub.f32 %v1349, %v1831
        %v1914 = vsub.f32 %v1351, %v1831
        %v1915 = vsub.f32 %v1355, %v1836
        %v1916 = vsub.f32 %v1357, %v1836
        %v1917 = vsub.f32 %v1359, %v1841
        %v1918 = vsub.f32 %v1361, %v1841
        %v1919 = vsub.f32 %v1365, %v1846
        %v1920 = vsub.f32 %v1367, %v1846
        %v1921 = vsub.f32 %v1369, %v1851
        %v1922 = vsub.f32 %v1371, %v1851
        %v1923 = vsub.f32 %v1375, %v1856
        %v1924 = vsub.f32 %v1377, %v1856
        %v1925 = vsub.f32 %v1379, %v1861
        %v1926 = vsub.f32 %v1381, %v1861
        %v1927 = vmul.f32 %v1863, 1.442695
        %v1928 = vpow.pop %v1927
        %v1929 = vmul.f32 %v1864, 1.442695
        %v1930 = vpow.pop %v1929
        %v1931 = vmul.f32 %v1865, 1.442695
        %v1932 = vpow.pop %v1931
        %v1933 = vmul.f32 %v1866, 1.442695
        %v1934 = vpow.pop %v1933
        %v1935 = vmul.f32 %v1867, 1.442695
        %v1936 = vpow.pop %v1935
        %v1937 = vmul.f32 %v1868, 1.442695
        %v1938 = vpow.pop %v1937
        %v1939 = vmul.f32 %v1869, 1.442695
        %v1940 = vpow.pop %v1939
        %v1941 = vmul.f32 %v1870, 1.442695
        %v1942 = vpow.pop %v1941
        %v1943 = vmul.f32 %v1871, 1.442695
        %v1944 = vpow.pop %v1943
        %v1945 = vmul.f32 %v1872, 1.442695
        %v1946 = vpow.pop %v1945
        %v1947 = vmul.f32 %v1873, 1.442695
        %v1948 = vpow.pop %v1947
        %v1949 = vmul.f32 %v1874, 1.442695
        %v1950 = vpow.pop %v1949
        %v1951 = vmul.f32 %v1875, 1.442695
        %v1952 = vpow.pop %v1951
        %v1953 = vmul.f32 %v1876, 1.442695
        %v1954 = vpow.pop %v1953
        %v1955 = vmul.f32 %v1877, 1.442695
        %v1956 = vpow.pop %v1955
        %v1957 = vmul.f32 %v1878, 1.442695
        %v1958 = vpow.pop %v1957
        %v1959 = vmul.f32 %v1879, 1.442695
        %v1960 = vpow.pop %v1959
        %v1961 = vmul.f32 %v1880, 1.442695
        %v1962 = vpow.pop %v1961
        %v1963 = vmul.f32 %v1881, 1.442695
        %v1964 = vpow.pop %v1963
        %v1965 = vmul.f32 %v1882, 1.442695
        %v1966 = vpow.pop %v1965
        %v1967 = vmul.f32 %v1883, 1.442695
        %v1968 = vpow.pop %v1967
        %v1969 = vmul.f32 %v1884, 1.442695
        %v1970 = vpow.pop %v1969
        %v1971 = vmul.f32 %v1885, 1.442695
        %v1972 = vpow.pop %v1971
        %v1973 = vmul.f32 %v1886, 1.442695
        %v1974 = vpow.pop %v1973
        %v1975 = vmul.f32 %v1887, 1.442695
        %v1976 = vpow.pop %v1975
        %v1977 = vmul.f32 %v1888, 1.442695
        %v1978 = vpow.pop %v1977
        %v1979 = vmul.f32 %v1889, 1.442695
        %v1980 = vpow.pop %v1979
        %v1981 = vmul.f32 %v1890, 1.442695
        %v1982 = vpow.pop %v1981
        %v1983 = vmul.f32 %v1891, 1.442695
        %v1984 = vpow.pop %v1983
        %v1985 = vmul.f32 %v1892, 1.442695
        %v1986 = vpow.pop %v1985
        %v1987 = vmul.f32 %v1893, 1.442695
        %v1988 = vpow.pop %v1987
        %v1989 = vmul.f32 %v1894, 1.442695
        %v1990 = vpow.pop %v1989
        %v1991 = vmul.f32 %v1895, 1.442695
        %v1992 = vpow.pop %v1991
        %v1993 = vmul.f32 %v1896, 1.442695
        %v1994 = vpow.pop %v1993
        %v1995 = vmul.f32 %v1897, 1.442695
        %v1996 = vpow.pop %v1995
        %v1997 = vmul.f32 %v1898, 1.442695
        %v1998 = vpow.pop %v1997
        %v1999 = vmul.f32 %v1899, 1.442695
        %v2000 = vpow.pop %v1999
        %v2001 = vmul.f32 %v1900, 1.442695
        %v2002 = vpow.pop %v2001
        %v2003 = vmul.f32 %v1901, 1.442695
        %v2004 = vpow.pop %v2003
        %v2005 = vmul.f32 %v1902, 1.442695
        %v2006 = vpow.pop %v2005
        %v2007 = vmul.f32 %v1903, 1.442695
        %v2008 = vpow.pop %v2007
        %v2009 = vmul.f32 %v1904, 1.442695
        %v2010 = vpow.pop %v2009
        %v2011 = vmul.f32 %v1905, 1.442695
        %v2012 = vpow.pop %v2011
        %v2013 = vmul.f32 %v1906, 1.442695
        %v2014 = vpow.pop %v2013
        %v2015 = vmul.f32 %v1907, 1.442695
        %v2016 = vpow.pop %v2015
        %v2017 = vmul.f32 %v1908, 1.442695
        %v2018 = vpow.pop %v2017
        %v2019 = vmul.f32 %v1909, 1.442695
        %v2020 = vpow.pop %v2019
        %v2021 = vmul.f32 %v1910, 1.442695
        %v2022 = vpow.pop %v2021
        %v2023 = vmul.f32 %v1911, 1.442695
        %v2024 = vpow.pop %v2023
        %v2025 = vmul.f32 %v1912, 1.442695
        %v2026 = vpow.pop %v2025
        %v2027 = vmul.f32 %v1913, 1.442695
        %v2028 = vpow.pop %v2027
        %v2029 = vmul.f32 %v1914, 1.442695
        %v2030 = vpow.pop %v2029
        %v2031 = vmul.f32 %v1915, 1.442695
        %v2032 = vpow.pop %v2031
        %v2033 = vmul.f32 %v1916, 1.442695
        %v2034 = vpow.pop %v2033
        %v2035 = vmul.f32 %v1917, 1.442695
        %v2036 = vpow.pop %v2035
        %v2037 = vmul.f32 %v1918, 1.442695
        %v2038 = vpow.pop %v2037
        %v2039 = vmul.f32 %v1919, 1.442695
        %v2040 = vpow.pop %v2039
        %v2041 = vmul.f32 %v1920, 1.442695
        %v2042 = vpow.pop %v2041
        %v2043 = vmul.f32 %v1921, 1.442695
        %v2044 = vpow.pop %v2043
        %v2045 = vmul.f32 %v1922, 1.442695
        %v2046 = vpow.pop %v2045
        %v2047 = vmul.f32 %v1923, 1.442695
        %v2048 = vpow.pop %v2047
        %v2049 = vmul.f32 %v1924, 1.442695
        %v2050 = vpow.pop %v2049
        %v2051 = vmul.f32 %v1925, 1.442695
        %v2052 = vpow.pop %v2051
        %v2053 = vmul.f32 %v1926, 1.442695
        %v2054 = vpow.pop %v2053
        %v2055 = vadd.f32 %v1928, %v1930
        %2056 = vadd.xlane.f32.xlu0 %v2055
        %v2057 = vpop.xlane.xlu0 %2056
        %v2058 = vadd.f32 %v1932, %v1934
        %2059 = vadd.xlane.f32.xlu0 %v2058
        %v2060 = vpop.xlane.xlu0 %2059
        %v2061 = vadd.f32 %v1936, %v1938
        %2062 = vadd.xlane.f32.xlu0 %v2061
        %v2063 = vpop.xlane.xlu0 %2062
        %v2064 = vadd.f32 %v1940, %v1942
        %2065 = vadd.xlane.f32.xlu0 %v2064
        %v2066 = vpop.xlane.xlu0 %2065
        %v2067 = vadd.f32 %v1944, %v1946
        %2068 = vadd.xlane.f32.xlu0 %v2067
        %v2069 = vpop.xlane.xlu0 %2068
        %v2070 = vadd.f32 %v1948, %v1950
        %2071 = vadd.xlane.f32.xlu0 %v2070
        %v2072 = vpop.xlane.xlu0 %2071
        %v2073 = vadd.f32 %v1952, %v1954
        %2074 = vadd.xlane.f32.xlu0 %v2073
        %v2075 = vpop.xlane.xlu0 %2074
        %v2076 = vadd.f32 %v1956, %v1958
        %2077 = vadd.xlane.f32.xlu0 %v2076
        %v2078 = vpop.xlane.xlu0 %2077
        %v2079 = vadd.f32 %v1960, %v1962
        %2080 = vadd.xlane.f32.xlu0 %v2079
        %v2081 = vpop.xlane.xlu0 %2080
        %v2082 = vadd.f32 %v1964, %v1966
        %2083 = vadd.xlane.f32.xlu0 %v2082
        %v2084 = vpop.xlane.xlu0 %2083
        %v2085 = vadd.f32 %v1968, %v1970
        %2086 = vadd.xlane.f32.xlu0 %v2085
        %v2087 = vpop.xlane.xlu0 %2086
        %v2088 = vadd.f32 %v1972, %v1974
        %2089 = vadd.xlane.f32.xlu0 %v2088
        %v2090 = vpop.xlane.xlu0 %2089
        %v2091 = vadd.f32 %v1976, %v1978
        %2092 = vadd.xlane.f32.xlu0 %v2091
        %v2093 = vpop.xlane.xlu0 %2092
        %v2094 = vadd.f32 %v1980, %v1982
        %2095 = vadd.xlane.f32.xlu0 %v2094
        %v2096 = vpop.xlane.xlu0 %2095
        %v2097 = vadd.f32 %v1984, %v1986
        %2098 = vadd.xlane.f32.xlu0 %v2097
        %v2099 = vpop.xlane.xlu0 %2098
        %v2100 = vadd.f32 %v1988, %v1990
        %2101 = vadd.xlane.f32.xlu0 %v2100
        %v2102 = vpop.xlane.xlu0 %2101
        %v2103 = vadd.f32 %v1992, %v1994
        %2104 = vadd.xlane.f32.xlu0 %v2103
        %v2105 = vpop.xlane.xlu0 %2104
        %v2106 = vadd.f32 %v1996, %v1998
        %2107 = vadd.xlane.f32.xlu0 %v2106
        %v2108 = vpop.xlane.xlu0 %2107
        %v2109 = vadd.f32 %v2000, %v2002
        %2110 = vadd.xlane.f32.xlu0 %v2109
        %v2111 = vpop.xlane.xlu0 %2110
        %v2112 = vadd.f32 %v2004, %v2006
        %2113 = vadd.xlane.f32.xlu0 %v2112
        %v2114 = vpop.xlane.xlu0 %2113
        %v2115 = vadd.f32 %v2008, %v2010
        %2116 = vadd.xlane.f32.xlu0 %v2115
        %v2117 = vpop.xlane.xlu0 %2116
        %v2118 = vadd.f32 %v2012, %v2014
        %2119 = vadd.xlane.f32.xlu0 %v2118
        %v2120 = vpop.xlane.xlu0 %2119
        %v2121 = vadd.f32 %v2016, %v2018
        %2122 = vadd.xlane.f32.xlu0 %v2121
        %v2123 = vpop.xlane.xlu0 %2122
        %v2124 = vadd.f32 %v2020, %v2022
        %2125 = vadd.xlane.f32.xlu0 %v2124
        %v2126 = vpop.xlane.xlu0 %2125
        %v2127 = vadd.f32 %v2024, %v2026
        %2128 = vadd.xlane.f32.xlu0 %v2127
        %v2129 = vpop.xlane.xlu0 %2128
        %v2130 = vadd.f32 %v2028, %v2030
        %2131 = vadd.xlane.f32.xlu0 %v2130
        %v2132 = vpop.xlane.xlu0 %2131
        %v2133 = vadd.f32 %v2032, %v2034
        %2134 = vadd.xlane.f32.xlu0 %v2133
        %v2135 = vpop.xlane.xlu0 %2134
        %v2136 = vadd.f32 %v2036, %v2038
        %2137 = vadd.xlane.f32.xlu0 %v2136
        %v2138 = vpop.xlane.xlu0 %2137
        %v2139 = vadd.f32 %v2040, %v2042
        %2140 = vadd.xlane.f32.xlu0 %v2139
        %v2141 = vpop.xlane.xlu0 %2140
        %v2142 = vadd.f32 %v2044, %v2046
        %2143 = vadd.xlane.f32.xlu0 %v2142
        %v2144 = vpop.xlane.xlu0 %2143
        %v2145 = vadd.f32 %v2048, %v2050
        %2146 = vadd.xlane.f32.xlu0 %v2145
        %v2147 = vpop.xlane.xlu0 %2146
        %v2148 = vadd.f32 %v2052, %v2054
        %2149 = vadd.xlane.f32.xlu0 %v2148
        %v2150 = vpop.xlane.xlu0 %2149
        %v2151 = vadd.f32 %v1671, %v2057
        %v2152 = vadd.f32 %v1672, %v2060
        %v2153 = vadd.f32 %v1673, %v2063
        %v2154 = vadd.f32 %v1674, %v2066
        %v2155 = vadd.f32 %v1675, %v2069
        %v2156 = vadd.f32 %v1676, %v2072
        %v2157 = vadd.f32 %v1677, %v2075
        %v2158 = vadd.f32 %v1678, %v2078
        %v2159 = vadd.f32 %v1679, %v2081
        %v2160 = vadd.f32 %v1680, %v2084
        %v2161 = vadd.f32 %v1681, %v2087
        %v2162 = vadd.f32 %v1682, %v2090
        %v2163 = vadd.f32 %v1683, %v2093
        %v2164 = vadd.f32 %v1684, %v2096
        %v2165 = vadd.f32 %v1685, %v2099
        %v2166 = vadd.f32 %v1686, %v2102
        %v2167 = vadd.f32 %v1687, %v2105
        %v2168 = vadd.f32 %v1688, %v2108
        %v2169 = vadd.f32 %v1689, %v2111
        %v2170 = vadd.f32 %v1690, %v2114
        %v2171 = vadd.f32 %v1691, %v2117
        %v2172 = vadd.f32 %v1692, %v2120
        %v2173 = vadd.f32 %v1693, %v2123
        %v2174 = vadd.f32 %v1694, %v2126
        %v2175 = vadd.f32 %v1695, %v2129
        %v2176 = vadd.f32 %v1696, %v2132
        %v2177 = vadd.f32 %v1697, %v2135
        %v2178 = vadd.f32 %v1698, %v2138
        %v2179 = vadd.f32 %v1699, %v2141
        %v2180 = vadd.f32 %v1700, %v2144
        %v2181 = vadd.f32 %v1701, %v2147
        %v2182 = vadd.f32 %v1702, %v2150
        %vm2183 = vcmask 7168
        %2184 = vst.msk [vmem:[#allocation3] sm:$0xff] %vm2183, %v2151
        %2185 = vst.msk [vmem:[#allocation3 + $0x8] sm:$0xff] %vm2183, %v2152
        %2186 = vst.msk [vmem:[#allocation3 + $0x10] sm:$0xff] %vm2183, %v2153
        %2187 = vst.msk [vmem:[#allocation3 + $0x18] sm:$0xff] %vm2183, %v2154
        %2188 = vst.msk [vmem:[#allocation3 + $0x20] sm:$0xff] %vm2183, %v2155
        %2189 = vst.msk [vmem:[#allocation3 + $0x28] sm:$0xff] %vm2183, %v2156
        %2190 = vst.msk [vmem:[#allocation3 + $0x30] sm:$0xff] %vm2183, %v2157
        %2191 = vst.msk [vmem:[#allocation3 + $0x38] sm:$0xff] %vm2183, %v2158
        %2192 = vst.msk [vmem:[#allocation3 + $0x40] sm:$0xff] %vm2183, %v2159
        %2193 = vst.msk [vmem:[#allocation3 + $0x48] sm:$0xff] %vm2183, %v2160
        %2194 = vst.msk [vmem:[#allocation3 + $0x50] sm:$0xff] %vm2183, %v2161
        %2195 = vst.msk [vmem:[#allocation3 + $0x58] sm:$0xff] %vm2183, %v2162
        %2196 = vst.msk [vmem:[#allocation3 + $0x60] sm:$0xff] %vm2183, %v2163
        %2197 = vst.msk [vmem:[#allocation3 + $0x68] sm:$0xff] %vm2183, %v2164
        %2198 = vst.msk [vmem:[#allocation3 + $0x70] sm:$0xff] %vm2183, %v2165
        %2199 = vst.msk [vmem:[#allocation3 + $0x78] sm:$0xff] %vm2183, %v2166
        %2200 = vst.msk [vmem:[#allocation3 + $0x80] sm:$0xff] %vm2183, %v2167
        %2201 = vst.msk [vmem:[#allocation3 + $0x88] sm:$0xff] %vm2183, %v2168
        %2202 = vst.msk [vmem:[#allocation3 + $0x90] sm:$0xff] %vm2183, %v2169
        %2203 = vst.msk [vmem:[#allocation3 + $0x98] sm:$0xff] %vm2183, %v2170
        %2204 = vst.msk [vmem:[#allocation3 + $0xa0] sm:$0xff] %vm2183, %v2171
        %2205 = vst.msk [vmem:[#allocation3 + $0xa8] sm:$0xff] %vm2183, %v2172
        %2206 = vst.msk [vmem:[#allocation3 + $0xb0] sm:$0xff] %vm2183, %v2173
        %2207 = vst.msk [vmem:[#allocation3 + $0xb8] sm:$0xff] %vm2183, %v2174
        %2208 = vst.msk [vmem:[#allocation3 + $0xc0] sm:$0xff] %vm2183, %v2175
        %2209 = vst.msk [vmem:[#allocation3 + $0xc8] sm:$0xff] %vm2183, %v2176
        %2210 = vst.msk [vmem:[#allocation3 + $0xd0] sm:$0xff] %vm2183, %v2177
        %2211 = vst.msk [vmem:[#allocation3 + $0xd8] sm:$0xff] %vm2183, %v2178
        %2212 = vst.msk [vmem:[#allocation3 + $0xe0] sm:$0xff] %vm2183, %v2179
        %2213 = vst.msk [vmem:[#allocation3 + $0xe8] sm:$0xff] %vm2183, %v2180
        %2214 = vst.msk [vmem:[#allocation3 + $0xf0] sm:$0xff] %vm2183, %v2181
        %2215 = vst.msk [vmem:[#allocation3 + $0xf8] sm:$0xff] %vm2183, %v2182
        %2216 = vst.msk [vmem:[#allocation2] sm:$0xff] %vm2183, %v1511
        %2217 = vst.msk [vmem:[#allocation2 + $0x8] sm:$0xff] %vm2183, %v1512
        %2218 = vst.msk [vmem:[#allocation2 + $0x10] sm:$0xff] %vm2183, %v1513
        %2219 = vst.msk [vmem:[#allocation2 + $0x18] sm:$0xff] %vm2183, %v1514
        %2220 = vst.msk [vmem:[#allocation2 + $0x20] sm:$0xff] %vm2183, %v1515
        %2221 = vst.msk [vmem:[#allocation2 + $0x28] sm:$0xff] %vm2183, %v1516
        %2222 = vst.msk [vmem:[#allocation2 + $0x30] sm:$0xff] %vm2183, %v1517
        %2223 = vst.msk [vmem:[#allocation2 + $0x38] sm:$0xff] %vm2183, %v1518
        %2224 = vst.msk [vmem:[#allocation2 + $0x40] sm:$0xff] %vm2183, %v1519
        %2225 = vst.msk [vmem:[#allocation2 + $0x48] sm:$0xff] %vm2183, %v1520
        %2226 = vst.msk [vmem:[#allocation2 + $0x50] sm:$0xff] %vm2183, %v1521
        %2227 = vst.msk [vmem:[#allocation2 + $0x58] sm:$0xff] %vm2183, %v1522
        %2228 = vst.msk [vmem:[#allocation2 + $0x60] sm:$0xff] %vm2183, %v1523
        %2229 = vst.msk [vmem:[#allocation2 + $0x68] sm:$0xff] %vm2183, %v1524
        %2230 = vst.msk [vmem:[#allocation2 + $0x70] sm:$0xff] %vm2183, %v1525
        %2231 = vst.msk [vmem:[#allocation2 + $0x78] sm:$0xff] %vm2183, %v1526
        %2232 = vst.msk [vmem:[#allocation2 + $0x80] sm:$0xff] %vm2183, %v1527
        %2233 = vst.msk [vmem:[#allocation2 + $0x88] sm:$0xff] %vm2183, %v1528
        %2234 = vst.msk [vmem:[#allocation2 + $0x90] sm:$0xff] %vm2183, %v1529
        %2235 = vst.msk [vmem:[#allocation2 + $0x98] sm:$0xff] %vm2183, %v1530
        %2236 = vst.msk [vmem:[#allocation2 + $0xa0] sm:$0xff] %vm2183, %v1531
        %2237 = vst.msk [vmem:[#allocation2 + $0xa8] sm:$0xff] %vm2183, %v1532
        %2238 = vst.msk [vmem:[#allocation2 + $0xb0] sm:$0xff] %vm2183, %v1533
        %2239 = vst.msk [vmem:[#allocation2 + $0xb8] sm:$0xff] %vm2183, %v1534
        %2240 = vst.msk [vmem:[#allocation2 + $0xc0] sm:$0xff] %vm2183, %v1535
        %2241 = vst.msk [vmem:[#allocation2 + $0xc8] sm:$0xff] %vm2183, %v1536
        %2242 = vst.msk [vmem:[#allocation2 + $0xd0] sm:$0xff] %vm2183, %v1537
        %2243 = vst.msk [vmem:[#allocation2 + $0xd8] sm:$0xff] %vm2183, %v1538
        %2244 = vst.msk [vmem:[#allocation2 + $0xe0] sm:$0xff] %vm2183, %v1539
        %2245 = vst.msk [vmem:[#allocation2 + $0xe8] sm:$0xff] %vm2183, %v1540
        %2246 = vst.msk [vmem:[#allocation2 + $0xf0] sm:$0xff] %vm2183, %v1541
        %2247 = vst.msk [vmem:[#allocation2 + $0xf8] sm:$0xff] %vm2183, %v1542
        %p2248 = scmp.eq.s32.totalorder %s24, 1
        // Predicated region
        $region95: #{tpu_custom_call.1} parent=81 // pred_check
          %p2249 = pneg %p2248
        $region96: #{tpu_custom_call.1} parent=81 // pred_check_branch
          %2251 = sbr.rel (%p2249) target = $region98
        $region97: #{tpu_custom_call.1} parent=81 // pred_region
          %v2252 = vld [vmem:[#allocation2] sm:$0xff]
          %v2253 = vld [vmem:[#allocation2 + $0x8] sm:$0xff]
          %v2254 = vld [vmem:[#allocation2 + $0x10] sm:$0xff]
          %v2255 = vld [vmem:[#allocation2 + $0x18] sm:$0xff]
          %v2256 = vld [vmem:[#allocation2 + $0x20] sm:$0xff]
          %v2257 = vld [vmem:[#allocation2 + $0x28] sm:$0xff]
          %v2258 = vld [vmem:[#allocation2 + $0x30] sm:$0xff]
          %v2259 = vld [vmem:[#allocation2 + $0x38] sm:$0xff]
          %v2260 = vld [vmem:[#allocation2 + $0x40] sm:$0xff]
          %v2261 = vld [vmem:[#allocation2 + $0x48] sm:$0xff]
          %v2262 = vld [vmem:[#allocation2 + $0x50] sm:$0xff]
          %v2263 = vld [vmem:[#allocation2 + $0x58] sm:$0xff]
          %v2264 = vld [vmem:[#allocation2 + $0x60] sm:$0xff]
          %v2265 = vld [vmem:[#allocation2 + $0x68] sm:$0xff]
          %v2266 = vld [vmem:[#allocation2 + $0x70] sm:$0xff]
          %v2267 = vld [vmem:[#allocation2 + $0x78] sm:$0xff]
          %v2268 = vld [vmem:[#allocation2 + $0x80] sm:$0xff]
          %v2269 = vld [vmem:[#allocation2 + $0x88] sm:$0xff]
          %v2270 = vld [vmem:[#allocation2 + $0x90] sm:$0xff]
          %v2271 = vld [vmem:[#allocation2 + $0x98] sm:$0xff]
          %v2272 = vld [vmem:[#allocation2 + $0xa0] sm:$0xff]
          %v2273 = vld [vmem:[#allocation2 + $0xa8] sm:$0xff]
          %v2274 = vld [vmem:[#allocation2 + $0xb0] sm:$0xff]
          %v2275 = vld [vmem:[#allocation2 + $0xb8] sm:$0xff]
          %v2276 = vld [vmem:[#allocation2 + $0xc0] sm:$0xff]
          %v2277 = vld [vmem:[#allocation2 + $0xc8] sm:$0xff]
          %v2278 = vld [vmem:[#allocation2 + $0xd0] sm:$0xff]
          %v2279 = vld [vmem:[#allocation2 + $0xd8] sm:$0xff]
          %v2280 = vld [vmem:[#allocation2 + $0xe0] sm:$0xff]
          %v2281 = vld [vmem:[#allocation2 + $0xe8] sm:$0xff]
          %v2282 = vld [vmem:[#allocation2 + $0xf0] sm:$0xff]
          %v2283 = vld [vmem:[#allocation2 + $0xf8] sm:$0xff]
          %v2284 = vld [vmem:[#allocation3] sm:$0xff]
          %v2285 = vld [vmem:[#allocation3 + $0x8] sm:$0xff]
          %v2286 = vld [vmem:[#allocation3 + $0x10] sm:$0xff]
          %v2287 = vld [vmem:[#allocation3 + $0x18] sm:$0xff]
          %v2288 = vld [vmem:[#allocation3 + $0x20] sm:$0xff]
          %v2289 = vld [vmem:[#allocation3 + $0x28] sm:$0xff]
          %v2290 = vld [vmem:[#allocation3 + $0x30] sm:$0xff]
          %v2291 = vld [vmem:[#allocation3 + $0x38] sm:$0xff]
          %v2292 = vld [vmem:[#allocation3 + $0x40] sm:$0xff]
          %v2293 = vld [vmem:[#allocation3 + $0x48] sm:$0xff]
          %v2294 = vld [vmem:[#allocation3 + $0x50] sm:$0xff]
          %v2295 = vld [vmem:[#allocation3 + $0x58] sm:$0xff]
          %v2296 = vld [vmem:[#allocation3 + $0x60] sm:$0xff]
          %v2297 = vld [vmem:[#allocation3 + $0x68] sm:$0xff]
          %v2298 = vld [vmem:[#allocation3 + $0x70] sm:$0xff]
          %v2299 = vld [vmem:[#allocation3 + $0x78] sm:$0xff]
          %v2300 = vld [vmem:[#allocation3 + $0x80] sm:$0xff]
          %v2301 = vld [vmem:[#allocation3 + $0x88] sm:$0xff]
          %v2302 = vld [vmem:[#allocation3 + $0x90] sm:$0xff]
          %v2303 = vld [vmem:[#allocation3 + $0x98] sm:$0xff]
          %v2304 = vld [vmem:[#allocation3 + $0xa0] sm:$0xff]
          %v2305 = vld [vmem:[#allocation3 + $0xa8] sm:$0xff]
          %v2306 = vld [vmem:[#allocation3 + $0xb0] sm:$0xff]
          %v2307 = vld [vmem:[#allocation3 + $0xb8] sm:$0xff]
          %v2308 = vld [vmem:[#allocation3 + $0xc0] sm:$0xff]
          %v2309 = vld [vmem:[#allocation3 + $0xc8] sm:$0xff]
          %v2310 = vld [vmem:[#allocation3 + $0xd0] sm:$0xff]
          %v2311 = vld [vmem:[#allocation3 + $0xd8] sm:$0xff]
          %v2312 = vld [vmem:[#allocation3 + $0xe0] sm:$0xff]
          %v2313 = vld [vmem:[#allocation3 + $0xe8] sm:$0xff]
          %v2314 = vld [vmem:[#allocation3 + $0xf0] sm:$0xff]
          %v2315 = vld [vmem:[#allocation3 + $0xf8] sm:$0xff]
          %v2316 = vlog2.pop %v2284
          %v2317 = vmul.f32 %v2316, 0.6931472
          %v2318 = vlog2.pop %v2285
          %v2319 = vmul.f32 %v2318, 0.6931472
          %v2320 = vlog2.pop %v2286
          %v2321 = vmul.f32 %v2320, 0.6931472
          %v2322 = vlog2.pop %v2287
          %v2323 = vmul.f32 %v2322, 0.6931472
          %v2324 = vlog2.pop %v2288
          %v2325 = vmul.f32 %v2324, 0.6931472
          %v2326 = vlog2.pop %v2289
          %v2327 = vmul.f32 %v2326, 0.6931472
          %v2328 = vlog2.pop %v2290
          %v2329 = vmul.f32 %v2328, 0.6931472
          %v2330 = vlog2.pop %v2291
          %v2331 = vmul.f32 %v2330, 0.6931472
          %v2332 = vlog2.pop %v2292
          %v2333 = vmul.f32 %v2332, 0.6931472
          %v2334 = vlog2.pop %v2293
          %v2335 = vmul.f32 %v2334, 0.6931472
          %v2336 = vlog2.pop %v2294
          %v2337 = vmul.f32 %v2336, 0.6931472
          %v2338 = vlog2.pop %v2295
          %v2339 = vmul.f32 %v2338, 0.6931472
          %v2340 = vlog2.pop %v2296
          %v2341 = vmul.f32 %v2340, 0.6931472
          %v2342 = vlog2.pop %v2297
          %v2343 = vmul.f32 %v2342, 0.6931472
          %v2344 = vlog2.pop %v2298
          %v2345 = vmul.f32 %v2344, 0.6931472
          %v2346 = vlog2.pop %v2299
          %v2347 = vmul.f32 %v2346, 0.6931472
          %v2348 = vlog2.pop %v2300
          %v2349 = vmul.f32 %v2348, 0.6931472
          %v2350 = vlog2.pop %v2301
          %v2351 = vmul.f32 %v2350, 0.6931472
          %v2352 = vlog2.pop %v2302
          %v2353 = vmul.f32 %v2352, 0.6931472
          %v2354 = vlog2.pop %v2303
          %v2355 = vmul.f32 %v2354, 0.6931472
          %v2356 = vlog2.pop %v2304
          %v2357 = vmul.f32 %v2356, 0.6931472
          %v2358 = vlog2.pop %v2305
          %v2359 = vmul.f32 %v2358, 0.6931472
          %v2360 = vlog2.pop %v2306
          %v2361 = vmul.f32 %v2360, 0.6931472
          %v2362 = vlog2.pop %v2307
          %v2363 = vmul.f32 %v2362, 0.6931472
          %v2364 = vlog2.pop %v2308
          %v2365 = vmul.f32 %v2364, 0.6931472
          %v2366 = vlog2.pop %v2309
          %v2367 = vmul.f32 %v2366, 0.6931472
          %v2368 = vlog2.pop %v2310
          %v2369 = vmul.f32 %v2368, 0.6931472
          %v2370 = vlog2.pop %v2311
          %v2371 = vmul.f32 %v2370, 0.6931472
          %v2372 = vlog2.pop %v2312
          %v2373 = vmul.f32 %v2372, 0.6931472
          %v2374 = vlog2.pop %v2313
          %v2375 = vmul.f32 %v2374, 0.6931472
          %v2376 = vlog2.pop %v2314
          %v2377 = vmul.f32 %v2376, 0.6931472
          %v2378 = vlog2.pop %v2315
          %v2379 = vmul.f32 %v2378, 0.6931472
          %v2380 = vadd.f32 %v2252, %v2317
          %v2381 = vadd.f32 %v2253, %v2319
          %v2382 = vadd.f32 %v2254, %v2321
          %v2383 = vadd.f32 %v2255, %v2323
          %v2384 = vadd.f32 %v2256, %v2325
          %v2385 = vadd.f32 %v2257, %v2327
          %v2386 = vadd.f32 %v2258, %v2329
          %v2387 = vadd.f32 %v2259, %v2331
          %v2388 = vadd.f32 %v2260, %v2333
          %v2389 = vadd.f32 %v2261, %v2335
          %v2390 = vadd.f32 %v2262, %v2337
          %v2391 = vadd.f32 %v2263, %v2339
          %v2392 = vadd.f32 %v2264, %v2341
          %v2393 = vadd.f32 %v2265, %v2343
          %v2394 = vadd.f32 %v2266, %v2345
          %v2395 = vadd.f32 %v2267, %v2347
          %v2396 = vadd.f32 %v2268, %v2349
          %v2397 = vadd.f32 %v2269, %v2351
          %v2398 = vadd.f32 %v2270, %v2353
          %v2399 = vadd.f32 %v2271, %v2355
          %v2400 = vadd.f32 %v2272, %v2357
          %v2401 = vadd.f32 %v2273, %v2359
          %v2402 = vadd.f32 %v2274, %v2361
          %v2403 = vadd.f32 %v2275, %v2363
          %v2404 = vadd.f32 %v2276, %v2365
          %v2405 = vadd.f32 %v2277, %v2367
          %v2406 = vadd.f32 %v2278, %v2369
          %v2407 = vadd.f32 %v2279, %v2371
          %v2408 = vadd.f32 %v2280, %v2373
          %v2409 = vadd.f32 %v2281, %v2375
          %v2410 = vadd.f32 %v2282, %v2377
          %v2411 = vadd.f32 %v2283, %v2379
          %2412 = vst.msk [vmem:[%s362] sm:$0xff] %vm2183, %v2380
          %2413 = vst.msk [vmem:[%s362 + $0x8] sm:$0xff] %vm2183, %v2381
          %2414 = vst.msk [vmem:[%s362 + $0x10] sm:$0xff] %vm2183, %v2382
          %2415 = vst.msk [vmem:[%s362 + $0x18] sm:$0xff] %vm2183, %v2383
          %2416 = vst.msk [vmem:[%s362 + $0x20] sm:$0xff] %vm2183, %v2384
          %2417 = vst.msk [vmem:[%s362 + $0x28] sm:$0xff] %vm2183, %v2385
          %2418 = vst.msk [vmem:[%s362 + $0x30] sm:$0xff] %vm2183, %v2386
          %2419 = vst.msk [vmem:[%s362 + $0x38] sm:$0xff] %vm2183, %v2387
          %2420 = vst.msk [vmem:[%s362 + $0x40] sm:$0xff] %vm2183, %v2388
          %2421 = vst.msk [vmem:[%s362 + $0x48] sm:$0xff] %vm2183, %v2389
          %2422 = vst.msk [vmem:[%s362 + $0x50] sm:$0xff] %vm2183, %v2390
          %2423 = vst.msk [vmem:[%s362 + $0x58] sm:$0xff] %vm2183, %v2391
          %2424 = vst.msk [vmem:[%s362 + $0x60] sm:$0xff] %vm2183, %v2392
          %2425 = vst.msk [vmem:[%s362 + $0x68] sm:$0xff] %vm2183, %v2393
          %2426 = vst.msk [vmem:[%s362 + $0x70] sm:$0xff] %vm2183, %v2394
          %2427 = vst.msk [vmem:[%s362 + $0x78] sm:$0xff] %vm2183, %v2395
          %2428 = vst.msk [vmem:[%s362 + $0x80] sm:$0xff] %vm2183, %v2396
          %2429 = vst.msk [vmem:[%s362 + $0x88] sm:$0xff] %vm2183, %v2397
          %2430 = vst.msk [vmem:[%s362 + $0x90] sm:$0xff] %vm2183, %v2398
          %2431 = vst.msk [vmem:[%s362 + $0x98] sm:$0xff] %vm2183, %v2399
          %2432 = vst.msk [vmem:[%s362 + $0xa0] sm:$0xff] %vm2183, %v2400
          %2433 = vst.msk [vmem:[%s362 + $0xa8] sm:$0xff] %vm2183, %v2401
          %2434 = vst.msk [vmem:[%s362 + $0xb0] sm:$0xff] %vm2183, %v2402
          %2435 = vst.msk [vmem:[%s362 + $0xb8] sm:$0xff] %vm2183, %v2403
          %2436 = vst.msk [vmem:[%s362 + $0xc0] sm:$0xff] %vm2183, %v2404
          %2437 = vst.msk [vmem:[%s362 + $0xc8] sm:$0xff] %vm2183, %v2405
          %2438 = vst.msk [vmem:[%s362 + $0xd0] sm:$0xff] %vm2183, %v2406
          %2439 = vst.msk [vmem:[%s362 + $0xd8] sm:$0xff] %vm2183, %v2407
          %2440 = vst.msk [vmem:[%s362 + $0xe0] sm:$0xff] %vm2183, %v2408
          %2441 = vst.msk [vmem:[%s362 + $0xe8] sm:$0xff] %vm2183, %v2409
          %2442 = vst.msk [vmem:[%s362 + $0xf0] sm:$0xff] %vm2183, %v2410
          %2443 = vst.msk [vmem:[%s362 + $0xf8] sm:$0xff] %vm2183, %v2411
        $region98: #{tpu_custom_call.1} parent=81 // pred_fallthru
          _
        %s2444 = smul.u32 32, %s23
        %p2445 = scmp.lt.s32.totalorder %s22, 1
        %s2446 = scalar_select %p2445, %s22, 1
        %p2447 = scmp.lt.s32.totalorder %s2444, 63
        %s2448 = scalar_select %p2447, %s2444, 63
        %s2449 = smul.addr %s2446, 64
        %s2450 = sadd.s32 %s2448, %s2449
        %s2451 = smul.addr %s2450, 8
        %s2452 = scalar_lea.vmem %s6, %s2451
        // Predicated region
        $region99: #{tpu_custom_call.1} parent=81 // pred_check
          %p2453 = pneg %p196
        $region100: #{tpu_custom_call.1} parent=81 // pred_check_branch
          %2455 = sbr.rel (%p2453) target = $region102
        $region101: #{tpu_custom_call.1} parent=81 // pred_region
          %s2456 = smul.u32 32, %s23
        $region102: #{tpu_custom_call.1} parent=81 // pred_fallthru
          _
      $region82: #{tpu_custom_call.1} parent=5 // pred_fallthru
        _
      %p2457 = scmp.le.s32.totalorder 2, %s12
      // Predicated region
      $region103: #{tpu_custom_call.1} parent=5 // pred_check
        %p2458 = pneg %p2457
      $region104: #{tpu_custom_call.1} parent=5 // pred_check_branch
        %2460 = sbr.rel (%p2458) target = $region106
      $region105: #{tpu_custom_call.1} parent=5 // pred_region
        %s2461 = ssub.s32 %s12, 2
        // Predicated region
        $region107: #{tpu_custom_call.1} parent=105 // pred_check
          %p2462 = pneg %p202
        $region108: #{tpu_custom_call.1} parent=105 // pred_check_branch
          %2464 = sbr.rel (%p2462) target = $region110
        $region109: #{tpu_custom_call.1} parent=105 // pred_region
          %s2465 = smul.u32 32, %s26
          %p2466 = scmp.lt.s32.totalorder %s25, 1
          %s2467 = scalar_select %p2466, %s25, 1
          %p2468 = scmp.lt.s32.totalorder %s2465, 63
          %s2469 = scalar_select %p2468, %s2465, 63
          %s2470 = smul.addr %s2467, 64
          %s2471 = sadd.s32 %s2469, %s2470
          %s2472 = smul.addr %s2471, 8
          %s2473 = scalar_lea.vmem %s6, %s2472
        $region110: #{tpu_custom_call.1} parent=105 // pred_fallthru
          _
      $region106: #{tpu_custom_call.1} parent=5 // pred_fallthru
        _
    $region6: #{tpu_custom_call.1} parent=1 // loop_footer
      %s16 = sadd.s32 1, %s12
    $region7: #{tpu_custom_call.1} parent=1 // loop_footer_branch
      %11 = sbr.rel target = $region3
    $region8: #{tpu_custom_call.1} parent=1 // loop_exit
      _

</llo_original>
